<compile_context>
chip_gen: v7x
topology: tpu7x:2x2x1
jax: 0.10.0
libtpu: 0.0.40
codegen_flags: <defaults>
</compile_context>

<pallas_src>
import functools

import numpy as np
import jax
import jax.numpy as jnp
from jax.experimental import pallas as pl
from jax.experimental.pallas import tpu as pltpu

LN_EPS = 1e-5


def _conv_block_kernel(x_ref, wt_ref, pv_ref, gsum_ref, o_ref, *, C, DC):
    """One batch element per grid step.

    x_ref  : (1, H, W*D*C)  channel-last; W, D and C fused on the lane axis
    wt_ref : (2, 27, W*D*C) per-conv depthwise taps, halo-masked, t=(kh*3+kw)*3+kd
    pv_ref : (8, W*D*C)     rows: b1, g1, be1, a1, b2, g2, be2, a2 (lane-tiled)
    gsum   : (WDC, WDC)     block-diag ones -> per-(h,w,d) channel-group sums
    """
    _, H, WDC = x_ref.shape
    inv_c = 1.0 / C

    xx = x_ref[0].astype(jnp.float32)                     # (H, WDC)
    gsum = gsum_ref[...]
    zrow = jnp.zeros((1, WDC), jnp.float32)

    def dwconv(y, widx, bias_row):
        wt = wt_ref[widx]                                 # (27, WDC), halo-masked
        # Three independent accumulators (one per kh) -> no 27-deep add chain.
        accs = [jnp.zeros((H, WDC), jnp.float32) for _ in range(3)]
        for kw in range(3):
            for kd in range(3):
                s = (kw - 1) * DC + (kd - 1) * C          # source lane offset
                # Lane rotation (XLU); wrapped lanes are zeroed via the masked
                # weight rows, so no padded / shifted copies are materialized.
                v = y if s == 0 else pltpu.roll(y, (-s) % WDC, axis=1)
                for kh in range(3):
                    t = (kh * 3 + kw) * 3 + kd
                    accs[kh] = accs[kh] + v * wt[t:t + 1, :]
        # kh halo: shift the per-kh partial sums by one row, zero-filling the
        # boundary row (only 2 small row-shift copies per conv).
        up = jnp.concatenate([zrow, accs[0][:H - 1, :]], axis=0)   # out[h]=acc0[h-1]
        dn = jnp.concatenate([accs[2][1:, :], zrow], axis=0)       # out[h]=acc2[h+1]
        return accs[1] + up + dn + pv_ref[bias_row:bias_row + 1, :]

    def layernorm(y, g_row, be_row):
        # LayerNorm over the C channels of every (h, w, d) site.  Groups are
        # contiguous C-lane groups, so stats come from ONE block-diagonal
        # matmul on the otherwise idle MXU: [y ; y*y] @ gsum.
        yy = jnp.concatenate([y, y * y], axis=0)                   # (2H, WDC)
        s = jnp.dot(yy, gsum, preferred_element_type=jnp.float32) * inv_c
        mean = s[:H]
        var = s[H:] - mean * mean
        return ((y - mean) * jax.lax.rsqrt(var + LN_EPS)
                * pv_ref[g_row:g_row + 1, :] + pv_ref[be_row:be_row + 1, :])

    def prelu(y, a_row):
        a = pv_ref[a_row:a_row + 1, :]
        return jnp.maximum(y, 0.0) + a * jnp.minimum(y, 0.0)

    y = dwconv(xx, 0, 0)
    y = prelu(layernorm(y, 1, 2), 3)
    y = dwconv(y, 1, 4)
    y = prelu(layernorm(y, 5, 6), 7)

    # residual multiply with the ORIGINAL input
    o_ref[0] = (y * xx).astype(o_ref.dtype)


def conv_block_forward(x, params):
    """x: (B, C, H, W, D), PyTorch layout. Returns the same shape and dtype."""
    B, C, H, W, D = x.shape
    DC = D * C
    WDC = W * DC
    out_dtype = x.dtype

    # channel-last with W, D, C fused on the minor (lane) axis; original dtype
    # (the f32 cast happens in-kernel, no extra HBM pass).
    x_cl = jnp.transpose(x, (0, 2, 3, 4, 1)).reshape(B, H, WDC)

    # Per-tap lane masks implementing the W / D zero halo (kh halo is handled
    # in-kernel).  lane i = w*D*C + d*C + c.
    lane = np.arange(WDC)
    wi = lane // DC
    di = (lane // C) % D
    tap_mask = np.ones((27, WDC), np.float32)
    for kh in range(3):
        for kw in range(3):
            for kd in range(3):
                t = (kh * 3 + kw) * 3 + kd
                ok = ((wi + kw - 1 >= 0) & (wi + kw - 1 < W) &
                      (di + kd - 1 >= 0) & (di + kd - 1 < D))
                tap_mask[t] = ok.astype(np.float32)
    tap_mask = jnp.asarray(tap_mask)

    def taps(w):   # (C, 1, 3, 3, 3) -> (27, WDC); row t = (kh*3 + kw)*3 + kd
        w_cl = jnp.transpose(w[:, 0], (1, 2, 3, 0)).reshape(27, C)
        return jnp.tile(w_cl.astype(jnp.float32), (1, W * D)) * tap_mask

    def chan(v):   # (C,) or (1,) per-channel vector -> (WDC,), tiled over W*D
        v = jnp.broadcast_to(jnp.asarray(v, jnp.float32).reshape(-1), (C,))
        return jnp.tile(v, (W * D,))

    wt = jnp.stack([taps(params['w1']), taps(params['w2'])])            # (2,27,WDC)
    pvec = jnp.stack([chan(params['b1']), chan(params['g1']),
                      chan(params['be1']), chan(params['a1']),
                      chan(params['b2']), chan(params['g2']),
                      chan(params['be2']), chan(params['a2'])])         # (8, WDC)
    # block-diagonal ones: group-sum-and-broadcast over each C-sized lane group
    gsum = jnp.kron(jnp.eye(W * D, dtype=jnp.float32),
                    jnp.ones((C, C), jnp.float32))                      # (WDC,WDC)

    # VMEM budget derived from shapes (double-buffered in/out blocks, params,
    # gsum, in-kernel temporaries) -- well inside v7x's 64 MiB physical VMEM.
    in_bytes = jnp.dtype(x.dtype).itemsize
    out_bytes = jnp.dtype(out_dtype).itemsize
    vmem_bytes = int(4 * H * WDC * (in_bytes + out_bytes)
                     + (2 * 27 + 8) * WDC * 4 + WDC * WDC * 4
                     + 48 * H * WDC * 4) + (4 << 20)
    vmem_bytes = min(max(vmem_bytes, 16 << 20), 60 << 20)

    n_site = B * H * W * D
    cost = pl.CostEstimate(
        flops=int(2 * 27 * 2 * B * H * WDC              # two depthwise convs
                  + 2 * 2 * (2 * H) * WDC * WDC * B     # fused LN matmuls
                  + 30 * B * H * WDC),                  # LN/PReLU/residual elemwise
        transcendentals=int(2 * n_site),
        bytes_accessed=int((in_bytes + out_bytes) * B * H * WDC
                           + 4 * ((2 * 27 + 8) * WDC + WDC * WDC)))

    out_cl = pl.pallas_call(
        functools.partial(_conv_block_kernel, C=C, DC=DC),
        out_shape=jax.ShapeDtypeStruct((B, H, WDC), out_dtype),
        grid=(B,),
        in_specs=[
            pl.BlockSpec((1, H, WDC), lambda b: (b, 0, 0)),
            pl.BlockSpec((2, 27, WDC), lambda b: (0, 0, 0)),
            pl.BlockSpec((8, WDC), lambda b: (0, 0)),
            pl.BlockSpec((WDC, WDC), lambda b: (0, 0)),
        ],
        out_specs=pl.BlockSpec((1, H, WDC), lambda b: (b, 0, 0)),
        compiler_params=pltpu.CompilerParams(
            dimension_semantics=("parallel",),
            vmem_limit_bytes=vmem_bytes),
        cost_estimate=cost,
    )(x_cl, wt, pvec, gsum)

    out = out_cl.reshape(B, H, W, D, C)
    return jnp.transpose(out, (0, 4, 1, 2, 3)).astype(out_dtype)


# ---------------- pure-JAX reference (for verification only) ----------------
def ref_forward(x, params):
    C = x.shape[1]

    def dwconv(h, w, b):
        y = jax.lax.conv_general_dilated(
            h, w, window_strides=(1, 1, 1),
            padding=((1, 1), (1, 1), (1, 1)),
            dimension_numbers=('NCDHW', 'OIDHW', 'NCDHW'),
            feature_group_count=C)
        return y + b[None, :, None, None, None]

    def norm(h, g, be):
        m = jnp.mean(h, axis=1, keepdims=True)
        v = jnp.mean((h - m) ** 2, axis=1, keepdims=True)
        return ((h - m) / jnp.sqrt(v + LN_EPS)) * g[None, :, None, None, None] \
               + be[None, :, None, None, None]

    def prelu(h, a):
        return jnp.where(h > 0, h, a * h)

    y = prelu(norm(dwconv(x, params['w1'], params['b1']), params['g1'], params['be1']),
              params['a1'][0])
    y = prelu(norm(dwconv(y, params['w2'], params['b2']), params['g2'], params['be2']),
              params['a2'][0])
    return y * x


if __name__ == "__main__":
    # in_ch == out_ch (required by the final elementwise multiply in forward)
    B, C, H, W, D = 2, 4, 8, 8, 8
    key = jax.random.PRNGKey(0)
    ks = jax.random.split(key, 5)
    x = jax.random.normal(ks[0], (B, C, H, W, D), jnp.float32)

    params = dict(
        # depthwise Conv3d weights: (out_ch, in_ch/groups=1, 3, 3, 3)
        w1=jax.random.normal(ks[1], (C, 1, 3, 3, 3), jnp.float32) * 0.2,
        b1=jax.random.normal(ks[2], (C,), jnp.float32) * 0.1,
        g1=jnp.ones((C,), jnp.float32),        # LayerNorm weight (default init)
        be1=jnp.zeros((C,), jnp.float32),      # LayerNorm bias   (default init)
        a1=jnp.full((1,), 0.25, jnp.float32),  # PReLU default init
        w2=jax.random.normal(ks[3], (C, 1, 3, 3, 3), jnp.float32) * 0.2,
        b2=jax.random.normal(ks[4], (C,), jnp.float32) * 0.1,
        g2=jnp.ones((C,), jnp.float32),
        be2=jnp.zeros((C,), jnp.float32),
        a2=jnp.full((1,), 0.25, jnp.float32),
    )

    out = jax.block_until_ready(conv_block_forward(x, params))
    ref = jax.block_until_ready(ref_forward(x, params))
    assert out.shape == x.shape and out.dtype == x.dtype
    err = float(jnp.max(jnp.abs(out - ref)))
    assert jnp.allclose(out, ref, atol=1e-4, rtol=1e-4), err
    print("KERNEL_OK")
</pallas_src>

<mosaic_0001>
module attributes {stable_mosaic.version = 11 : i64} {
  func.func @_conv_block_kernel(%arg0: i32, %arg1: memref<1x8x256xf32, #tpu.memory_space<vmem>>, %arg2: memref<2x27x256xf32, #tpu.memory_space<vmem>>, %arg3: memref<8x256xf32, #tpu.memory_space<vmem>>, %arg4: memref<256x256xf32, #tpu.memory_space<vmem>>, %arg5: memref<1x8x256xf32, #tpu.memory_space<vmem>>) attributes {dimension_semantics = [#tpu.dimension_semantics<parallel>], iteration_bounds = array<i64: 2>, scalar_prefetch = 0 : i64, scratch_operands = 0 : i64, tpu.core_type = #tpu.core_type<tc>, window_params = [{transform_indices = @transform_0, window_bounds = array<i64: 1, 8, 256>}, {pipeline_mode = #tpu.pipeline_mode<synchronous>, transform_indices = @transform_1, window_bounds = array<i64: 2, 27, 256>}, {pipeline_mode = #tpu.pipeline_mode<synchronous>, transform_indices = @transform_2, window_bounds = array<i64: 8, 256>}, {pipeline_mode = #tpu.pipeline_mode<synchronous>, transform_indices = @transform_3, window_bounds = array<i64: 256, 256>}, {transform_indices = @transform_4, window_bounds = array<i64: 1, 8, 256>}]} {
    %c0 = arith.constant 0 : index
    %c0_0 = arith.constant 0 : index
    %c0_1 = arith.constant 0 : index
    %0 = vector.load %arg1[%c0, %c0_0, %c0_1] : memref<1x8x256xf32, #tpu.memory_space<vmem>>, vector<1x8x256xf32>
    %1 = vector.shape_cast %0 : vector<1x8x256xf32> to vector<8x256xf32>
    %c0_2 = arith.constant 0 : index
    %c0_3 = arith.constant 0 : index
    %2 = vector.load %arg4[%c0_2, %c0_3] : memref<256x256xf32, #tpu.memory_space<vmem>>, vector<256x256xf32>
    %cst = arith.constant 0.000000e+00 : f32
    %3 = vector.broadcast %cst : f32 to vector<1x256xf32>
    %c0_4 = arith.constant 0 : index
    %c0_5 = arith.constant 0 : index
    %c0_6 = arith.constant 0 : index
    %4 = vector.load %arg2[%c0_4, %c0_5, %c0_6] : memref<2x27x256xf32, #tpu.memory_space<vmem>>, vector<1x27x256xf32>
    %5 = vector.shape_cast %4 : vector<1x27x256xf32> to vector<27x256xf32>
    %cst_7 = arith.constant 0.000000e+00 : f32
    %6 = vector.broadcast %cst_7 : f32 to vector<8x256xf32>
    %cst_8 = arith.constant 0.000000e+00 : f32
    %7 = vector.broadcast %cst_8 : f32 to vector<8x256xf32>
    %cst_9 = arith.constant 0.000000e+00 : f32
    %8 = vector.broadcast %cst_9 : f32 to vector<8x256xf32>
    %c36_i32 = arith.constant 36 : i32
    %9 = tpu.dynamic_rotate %1 by %c36_i32 dim 1 : vector<8x256xf32>, i32 -> vector<8x256xf32>
    %10 = vector.extract_strided_slice %5 {offsets = [0, 0], sizes = [1, 256], strides = [1, 1]} : vector<27x256xf32> to vector<1x256xf32>
    %11 = vector.broadcast %10 : vector<1x256xf32> to vector<8x256xf32>
    %12 = arith.mulf %9, %11 : vector<8x256xf32>
    %13 = arith.addf %6, %12 : vector<8x256xf32>
    %14 = vector.extract_strided_slice %5 {offsets = [9, 0], sizes = [1, 256], strides = [1, 1]} : vector<27x256xf32> to vector<1x256xf32>
    %15 = vector.broadcast %14 : vector<1x256xf32> to vector<8x256xf32>
    %16 = arith.mulf %9, %15 : vector<8x256xf32>
    %17 = arith.addf %7, %16 : vector<8x256xf32>
    %18 = vector.extract_strided_slice %5 {offsets = [18, 0], sizes = [1, 256], strides = [1, 1]} : vector<27x256xf32> to vector<1x256xf32>
    %19 = vector.broadcast %18 : vector<1x256xf32> to vector<8x256xf32>
    %20 = arith.mulf %9, %19 : vector<8x256xf32>
    %21 = arith.addf %8, %20 : vector<8x256xf32>
    %c32_i32 = arith.constant 32 : i32
    %22 = tpu.dynamic_rotate %1 by %c32_i32 dim 1 : vector<8x256xf32>, i32 -> vector<8x256xf32>
    %23 = vector.extract_strided_slice %5 {offsets = [1, 0], sizes = [1, 256], strides = [1, 1]} : vector<27x256xf32> to vector<1x256xf32>
    %24 = vector.broadcast %23 : vector<1x256xf32> to vector<8x256xf32>
    %25 = arith.mulf %22, %24 : vector<8x256xf32>
    %26 = arith.addf %13, %25 : vector<8x256xf32>
    %27 = vector.extract_strided_slice %5 {offsets = [10, 0], sizes = [1, 256], strides = [1, 1]} : vector<27x256xf32> to vector<1x256xf32>
    %28 = vector.broadcast %27 : vector<1x256xf32> to vector<8x256xf32>
    %29 = arith.mulf %22, %28 : vector<8x256xf32>
    %30 = arith.addf %17, %29 : vector<8x256xf32>
    %31 = vector.extract_strided_slice %5 {offsets = [19, 0], sizes = [1, 256], strides = [1, 1]} : vector<27x256xf32> to vector<1x256xf32>
    %32 = vector.broadcast %31 : vector<1x256xf32> to vector<8x256xf32>
    %33 = arith.mulf %22, %32 : vector<8x256xf32>
    %34 = arith.addf %21, %33 : vector<8x256xf32>
    %c28_i32 = arith.constant 28 : i32
    %35 = tpu.dynamic_rotate %1 by %c28_i32 dim 1 : vector<8x256xf32>, i32 -> vector<8x256xf32>
    %36 = vector.extract_strided_slice %5 {offsets = [2, 0], sizes = [1, 256], strides = [1, 1]} : vector<27x256xf32> to vector<1x256xf32>
    %37 = vector.broadcast %36 : vector<1x256xf32> to vector<8x256xf32>
    %38 = arith.mulf %35, %37 : vector<8x256xf32>
    %39 = arith.addf %26, %38 : vector<8x256xf32>
    %40 = vector.extract_strided_slice %5 {offsets = [11, 0], sizes = [1, 256], strides = [1, 1]} : vector<27x256xf32> to vector<1x256xf32>
    %41 = vector.broadcast %40 : vector<1x256xf32> to vector<8x256xf32>
    %42 = arith.mulf %35, %41 : vector<8x256xf32>
    %43 = arith.addf %30, %42 : vector<8x256xf32>
    %44 = vector.extract_strided_slice %5 {offsets = [20, 0], sizes = [1, 256], strides = [1, 1]} : vector<27x256xf32> to vector<1x256xf32>
    %45 = vector.broadcast %44 : vector<1x256xf32> to vector<8x256xf32>
    %46 = arith.mulf %35, %45 : vector<8x256xf32>
    %47 = arith.addf %34, %46 : vector<8x256xf32>
    %c4_i32 = arith.constant 4 : i32
    %48 = tpu.dynamic_rotate %1 by %c4_i32 dim 1 : vector<8x256xf32>, i32 -> vector<8x256xf32>
    %49 = vector.extract_strided_slice %5 {offsets = [3, 0], sizes = [1, 256], strides = [1, 1]} : vector<27x256xf32> to vector<1x256xf32>
    %50 = vector.broadcast %49 : vector<1x256xf32> to vector<8x256xf32>
    %51 = arith.mulf %48, %50 : vector<8x256xf32>
    %52 = arith.addf %39, %51 : vector<8x256xf32>
    %53 = vector.extract_strided_slice %5 {offsets = [12, 0], sizes = [1, 256], strides = [1, 1]} : vector<27x256xf32> to vector<1x256xf32>
    %54 = vector.broadcast %53 : vector<1x256xf32> to vector<8x256xf32>
    %55 = arith.mulf %48, %54 : vector<8x256xf32>
    %56 = arith.addf %43, %55 : vector<8x256xf32>
    %57 = vector.extract_strided_slice %5 {offsets = [21, 0], sizes = [1, 256], strides = [1, 1]} : vector<27x256xf32> to vector<1x256xf32>
    %58 = vector.broadcast %57 : vector<1x256xf32> to vector<8x256xf32>
    %59 = arith.mulf %48, %58 : vector<8x256xf32>
    %60 = arith.addf %47, %59 : vector<8x256xf32>
    %61 = vector.extract_strided_slice %5 {offsets = [4, 0], sizes = [1, 256], strides = [1, 1]} : vector<27x256xf32> to vector<1x256xf32>
    %62 = vector.broadcast %61 : vector<1x256xf32> to vector<8x256xf32>
    %63 = arith.mulf %1, %62 : vector<8x256xf32>
    %64 = arith.addf %52, %63 : vector<8x256xf32>
    %65 = vector.extract_strided_slice %5 {offsets = [13, 0], sizes = [1, 256], strides = [1, 1]} : vector<27x256xf32> to vector<1x256xf32>
    %66 = vector.broadcast %65 : vector<1x256xf32> to vector<8x256xf32>
    %67 = arith.mulf %1, %66 : vector<8x256xf32>
    %68 = arith.addf %56, %67 : vector<8x256xf32>
    %69 = vector.extract_strided_slice %5 {offsets = [22, 0], sizes = [1, 256], strides = [1, 1]} : vector<27x256xf32> to vector<1x256xf32>
    %70 = vector.broadcast %69 : vector<1x256xf32> to vector<8x256xf32>
    %71 = arith.mulf %1, %70 : vector<8x256xf32>
    %72 = arith.addf %60, %71 : vector<8x256xf32>
    %c252_i32 = arith.constant 252 : i32
    %73 = tpu.dynamic_rotate %1 by %c252_i32 dim 1 : vector<8x256xf32>, i32 -> vector<8x256xf32>
    %74 = vector.extract_strided_slice %5 {offsets = [5, 0], sizes = [1, 256], strides = [1, 1]} : vector<27x256xf32> to vector<1x256xf32>
    %75 = vector.broadcast %74 : vector<1x256xf32> to vector<8x256xf32>
    %76 = arith.mulf %73, %75 : vector<8x256xf32>
    %77 = arith.addf %64, %76 : vector<8x256xf32>
    %78 = vector.extract_strided_slice %5 {offsets = [14, 0], sizes = [1, 256], strides = [1, 1]} : vector<27x256xf32> to vector<1x256xf32>
    %79 = vector.broadcast %78 : vector<1x256xf32> to vector<8x256xf32>
    %80 = arith.mulf %73, %79 : vector<8x256xf32>
    %81 = arith.addf %68, %80 : vector<8x256xf32>
    %82 = vector.extract_strided_slice %5 {offsets = [23, 0], sizes = [1, 256], strides = [1, 1]} : vector<27x256xf32> to vector<1x256xf32>
    %83 = vector.broadcast %82 : vector<1x256xf32> to vector<8x256xf32>
    %84 = arith.mulf %73, %83 : vector<8x256xf32>
    %85 = arith.addf %72, %84 : vector<8x256xf32>
    %c228_i32 = arith.constant 228 : i32
    %86 = tpu.dynamic_rotate %1 by %c228_i32 dim 1 : vector<8x256xf32>, i32 -> vector<8x256xf32>
    %87 = vector.extract_strided_slice %5 {offsets = [6, 0], sizes = [1, 256], strides = [1, 1]} : vector<27x256xf32> to vector<1x256xf32>
    %88 = vector.broadcast %87 : vector<1x256xf32> to vector<8x256xf32>
    %89 = arith.mulf %86, %88 : vector<8x256xf32>
    %90 = arith.addf %77, %89 : vector<8x256xf32>
    %91 = vector.extract_strided_slice %5 {offsets = [15, 0], sizes = [1, 256], strides = [1, 1]} : vector<27x256xf32> to vector<1x256xf32>
    %92 = vector.broadcast %91 : vector<1x256xf32> to vector<8x256xf32>
    %93 = arith.mulf %86, %92 : vector<8x256xf32>
    %94 = arith.addf %81, %93 : vector<8x256xf32>
    %95 = vector.extract_strided_slice %5 {offsets = [24, 0], sizes = [1, 256], strides = [1, 1]} : vector<27x256xf32> to vector<1x256xf32>
    %96 = vector.broadcast %95 : vector<1x256xf32> to vector<8x256xf32>
    %97 = arith.mulf %86, %96 : vector<8x256xf32>
    %98 = arith.addf %85, %97 : vector<8x256xf32>
    %c224_i32 = arith.constant 224 : i32
    %99 = tpu.dynamic_rotate %1 by %c224_i32 dim 1 : vector<8x256xf32>, i32 -> vector<8x256xf32>
    %100 = vector.extract_strided_slice %5 {offsets = [7, 0], sizes = [1, 256], strides = [1, 1]} : vector<27x256xf32> to vector<1x256xf32>
    %101 = vector.broadcast %100 : vector<1x256xf32> to vector<8x256xf32>
    %102 = arith.mulf %99, %101 : vector<8x256xf32>
    %103 = arith.addf %90, %102 : vector<8x256xf32>
    %104 = vector.extract_strided_slice %5 {offsets = [16, 0], sizes = [1, 256], strides = [1, 1]} : vector<27x256xf32> to vector<1x256xf32>
    %105 = vector.broadcast %104 : vector<1x256xf32> to vector<8x256xf32>
    %106 = arith.mulf %99, %105 : vector<8x256xf32>
    %107 = arith.addf %94, %106 : vector<8x256xf32>
    %108 = vector.extract_strided_slice %5 {offsets = [25, 0], sizes = [1, 256], strides = [1, 1]} : vector<27x256xf32> to vector<1x256xf32>
    %109 = vector.broadcast %108 : vector<1x256xf32> to vector<8x256xf32>
    %110 = arith.mulf %99, %109 : vector<8x256xf32>
    %111 = arith.addf %98, %110 : vector<8x256xf32>
    %c220_i32 = arith.constant 220 : i32
    %112 = tpu.dynamic_rotate %1 by %c220_i32 dim 1 : vector<8x256xf32>, i32 -> vector<8x256xf32>
    %113 = vector.extract_strided_slice %5 {offsets = [8, 0], sizes = [1, 256], strides = [1, 1]} : vector<27x256xf32> to vector<1x256xf32>
    %114 = vector.broadcast %113 : vector<1x256xf32> to vector<8x256xf32>
    %115 = arith.mulf %112, %114 : vector<8x256xf32>
    %116 = arith.addf %103, %115 : vector<8x256xf32>
    %117 = vector.extract_strided_slice %5 {offsets = [17, 0], sizes = [1, 256], strides = [1, 1]} : vector<27x256xf32> to vector<1x256xf32>
    %118 = vector.broadcast %117 : vector<1x256xf32> to vector<8x256xf32>
    %119 = arith.mulf %112, %118 : vector<8x256xf32>
    %120 = arith.addf %107, %119 : vector<8x256xf32>
    %121 = vector.extract_strided_slice %5 {offsets = [26, 0], sizes = [1, 256], strides = [1, 1]} : vector<27x256xf32> to vector<1x256xf32>
    %122 = vector.broadcast %121 : vector<1x256xf32> to vector<8x256xf32>
    %123 = arith.mulf %112, %122 : vector<8x256xf32>
    %124 = arith.addf %111, %123 : vector<8x256xf32>
    %125 = vector.extract_strided_slice %116 {offsets = [0, 0], sizes = [7, 256], strides = [1, 1]} : vector<8x256xf32> to vector<7x256xf32>
    %126 = tpu.concatenate %3, %125 in 0 : vector<1x256xf32>, vector<7x256xf32> -> vector<8x256xf32>
    %127 = vector.extract_strided_slice %124 {offsets = [1, 0], sizes = [7, 256], strides = [1, 1]} : vector<8x256xf32> to vector<7x256xf32>
    %128 = tpu.concatenate %127, %3 in 0 : vector<7x256xf32>, vector<1x256xf32> -> vector<8x256xf32>
    %129 = arith.addf %120, %126 : vector<8x256xf32>
    %130 = arith.addf %129, %128 : vector<8x256xf32>
    %c0_10 = arith.constant 0 : index
    %c0_11 = arith.constant 0 : index
    %131 = vector.load %arg3[%c0_10, %c0_11] : memref<8x256xf32, #tpu.memory_space<vmem>>, vector<1x256xf32>
    %132 = vector.broadcast %131 : vector<1x256xf32> to vector<8x256xf32>
    %133 = arith.addf %130, %132 : vector<8x256xf32>
    %134 = arith.mulf %133, %133 : vector<8x256xf32>
    %135 = tpu.concatenate %133, %134 in 0 : vector<8x256xf32>, vector<8x256xf32> -> vector<16x256xf32>
    %cst_12 = arith.constant dense<0.000000e+00> : vector<16x256xf32>
    %136 = tpu.matmul %135, %2, %cst_12 {dimension_numbers = #tpu.dot_dimension_numbers<[1], [0], [0], [1], [0, 0, 1, 1], [], []>} : vector<16x256xf32>, vector<256x256xf32>, vector<16x256xf32> -> vector<16x256xf32>
    %cst_13 = arith.constant 2.500000e-01 : f32
    %137 = vector.broadcast %cst_13 : f32 to vector<16x256xf32>
    %138 = arith.mulf %136, %137 : vector<16x256xf32>
    %139 = vector.extract_strided_slice %138 {offsets = [0, 0], sizes = [8, 256], strides = [1, 1]} : vector<16x256xf32> to vector<8x256xf32>
    %140 = vector.extract_strided_slice %138 {offsets = [8, 0], sizes = [8, 256], strides = [1, 1]} : vector<16x256xf32> to vector<8x256xf32>
    %141 = arith.mulf %139, %139 : vector<8x256xf32>
    %142 = arith.subf %140, %141 : vector<8x256xf32>
    %143 = arith.subf %133, %139 : vector<8x256xf32>
    %cst_14 = arith.constant 9.99999974E-6 : f32
    %144 = vector.broadcast %cst_14 : f32 to vector<8x256xf32>
    %145 = arith.addf %142, %144 : vector<8x256xf32>
    %146 = math.rsqrt %145 : vector<8x256xf32>
    %147 = arith.mulf %143, %146 : vector<8x256xf32>
    %c1 = arith.constant 1 : index
    %c0_15 = arith.constant 0 : index
    %148 = vector.load %arg3[%c1, %c0_15] : memref<8x256xf32, #tpu.memory_space<vmem>>, vector<1x256xf32>
    %149 = vector.broadcast %148 : vector<1x256xf32> to vector<8x256xf32>
    %150 = arith.mulf %147, %149 : vector<8x256xf32>
    %c2 = arith.constant 2 : index
    %c0_16 = arith.constant 0 : index
    %151 = vector.load %arg3[%c2, %c0_16] : memref<8x256xf32, #tpu.memory_space<vmem>>, vector<1x256xf32>
    %152 = vector.broadcast %151 : vector<1x256xf32> to vector<8x256xf32>
    %153 = arith.addf %150, %152 : vector<8x256xf32>
    %c3 = arith.constant 3 : index
    %c0_17 = arith.constant 0 : index
    %154 = vector.load %arg3[%c3, %c0_17] : memref<8x256xf32, #tpu.memory_space<vmem>>, vector<1x256xf32>
    %cst_18 = arith.constant 0.000000e+00 : f32
    %155 = vector.broadcast %cst_18 : f32 to vector<8x256xf32>
    %156 = arith.maximumf %153, %155 : vector<8x256xf32>
    %cst_19 = arith.constant 0.000000e+00 : f32
    %157 = vector.broadcast %cst_19 : f32 to vector<8x256xf32>
    %158 = arith.minimumf %153, %157 : vector<8x256xf32>
    %159 = vector.broadcast %154 : vector<1x256xf32> to vector<8x256xf32>
    %160 = arith.mulf %159, %158 : vector<8x256xf32>
    %161 = arith.addf %156, %160 : vector<8x256xf32>
    %c1_20 = arith.constant 1 : index
    %c0_21 = arith.constant 0 : index
    %c0_22 = arith.constant 0 : index
    %162 = vector.load %arg2[%c1_20, %c0_21, %c0_22] : memref<2x27x256xf32, #tpu.memory_space<vmem>>, vector<1x27x256xf32>
    %163 = vector.shape_cast %162 : vector<1x27x256xf32> to vector<27x256xf32>
    %cst_23 = arith.constant 0.000000e+00 : f32
    %164 = vector.broadcast %cst_23 : f32 to vector<8x256xf32>
    %cst_24 = arith.constant 0.000000e+00 : f32
    %165 = vector.broadcast %cst_24 : f32 to vector<8x256xf32>
    %cst_25 = arith.constant 0.000000e+00 : f32
    %166 = vector.broadcast %cst_25 : f32 to vector<8x256xf32>
    %c36_i32_26 = arith.constant 36 : i32
    %167 = tpu.dynamic_rotate %161 by %c36_i32_26 dim 1 : vector<8x256xf32>, i32 -> vector<8x256xf32>
    %168 = vector.extract_strided_slice %163 {offsets = [0, 0], sizes = [1, 256], strides = [1, 1]} : vector<27x256xf32> to vector<1x256xf32>
    %169 = vector.broadcast %168 : vector<1x256xf32> to vector<8x256xf32>
    %170 = arith.mulf %167, %169 : vector<8x256xf32>
    %171 = arith.addf %164, %170 : vector<8x256xf32>
    %172 = vector.extract_strided_slice %163 {offsets = [9, 0], sizes = [1, 256], strides = [1, 1]} : vector<27x256xf32> to vector<1x256xf32>
    %173 = vector.broadcast %172 : vector<1x256xf32> to vector<8x256xf32>
    %174 = arith.mulf %167, %173 : vector<8x256xf32>
    %175 = arith.addf %165, %174 : vector<8x256xf32>
    %176 = vector.extract_strided_slice %163 {offsets = [18, 0], sizes = [1, 256], strides = [1, 1]} : vector<27x256xf32> to vector<1x256xf32>
    %177 = vector.broadcast %176 : vector<1x256xf32> to vector<8x256xf32>
    %178 = arith.mulf %167, %177 : vector<8x256xf32>
    %179 = arith.addf %166, %178 : vector<8x256xf32>
    %c32_i32_27 = arith.constant 32 : i32
    %180 = tpu.dynamic_rotate %161 by %c32_i32_27 dim 1 : vector<8x256xf32>, i32 -> vector<8x256xf32>
    %181 = vector.extract_strided_slice %163 {offsets = [1, 0], sizes = [1, 256], strides = [1, 1]} : vector<27x256xf32> to vector<1x256xf32>
    %182 = vector.broadcast %181 : vector<1x256xf32> to vector<8x256xf32>
    %183 = arith.mulf %180, %182 : vector<8x256xf32>
    %184 = arith.addf %171, %183 : vector<8x256xf32>
    %185 = vector.extract_strided_slice %163 {offsets = [10, 0], sizes = [1, 256], strides = [1, 1]} : vector<27x256xf32> to vector<1x256xf32>
    %186 = vector.broadcast %185 : vector<1x256xf32> to vector<8x256xf32>
    %187 = arith.mulf %180, %186 : vector<8x256xf32>
    %188 = arith.addf %175, %187 : vector<8x256xf32>
    %189 = vector.extract_strided_slice %163 {offsets = [19, 0], sizes = [1, 256], strides = [1, 1]} : vector<27x256xf32> to vector<1x256xf32>
    %190 = vector.broadcast %189 : vector<1x256xf32> to vector<8x256xf32>
    %191 = arith.mulf %180, %190 : vector<8x256xf32>
    %192 = arith.addf %179, %191 : vector<8x256xf32>
    %c28_i32_28 = arith.constant 28 : i32
    %193 = tpu.dynamic_rotate %161 by %c28_i32_28 dim 1 : vector<8x256xf32>, i32 -> vector<8x256xf32>
    %194 = vector.extract_strided_slice %163 {offsets = [2, 0], sizes = [1, 256], strides = [1, 1]} : vector<27x256xf32> to vector<1x256xf32>
    %195 = vector.broadcast %194 : vector<1x256xf32> to vector<8x256xf32>
    %196 = arith.mulf %193, %195 : vector<8x256xf32>
    %197 = arith.addf %184, %196 : vector<8x256xf32>
    %198 = vector.extract_strided_slice %163 {offsets = [11, 0], sizes = [1, 256], strides = [1, 1]} : vector<27x256xf32> to vector<1x256xf32>
    %199 = vector.broadcast %198 : vector<1x256xf32> to vector<8x256xf32>
    %200 = arith.mulf %193, %199 : vector<8x256xf32>
    %201 = arith.addf %188, %200 : vector<8x256xf32>
    %202 = vector.extract_strided_slice %163 {offsets = [20, 0], sizes = [1, 256], strides = [1, 1]} : vector<27x256xf32> to vector<1x256xf32>
    %203 = vector.broadcast %202 : vector<1x256xf32> to vector<8x256xf32>
    %204 = arith.mulf %193, %203 : vector<8x256xf32>
    %205 = arith.addf %192, %204 : vector<8x256xf32>
    %c4_i32_29 = arith.constant 4 : i32
    %206 = tpu.dynamic_rotate %161 by %c4_i32_29 dim 1 : vector<8x256xf32>, i32 -> vector<8x256xf32>
    %207 = vector.extract_strided_slice %163 {offsets = [3, 0], sizes = [1, 256], strides = [1, 1]} : vector<27x256xf32> to vector<1x256xf32>
    %208 = vector.broadcast %207 : vector<1x256xf32> to vector<8x256xf32>
    %209 = arith.mulf %206, %208 : vector<8x256xf32>
    %210 = arith.addf %197, %209 : vector<8x256xf32>
    %211 = vector.extract_strided_slice %163 {offsets = [12, 0], sizes = [1, 256], strides = [1, 1]} : vector<27x256xf32> to vector<1x256xf32>
    %212 = vector.broadcast %211 : vector<1x256xf32> to vector<8x256xf32>
    %213 = arith.mulf %206, %212 : vector<8x256xf32>
    %214 = arith.addf %201, %213 : vector<8x256xf32>
    %215 = vector.extract_strided_slice %163 {offsets = [21, 0], sizes = [1, 256], strides = [1, 1]} : vector<27x256xf32> to vector<1x256xf32>
    %216 = vector.broadcast %215 : vector<1x256xf32> to vector<8x256xf32>
    %217 = arith.mulf %206, %216 : vector<8x256xf32>
    %218 = arith.addf %205, %217 : vector<8x256xf32>
    %219 = vector.extract_strided_slice %163 {offsets = [4, 0], sizes = [1, 256], strides = [1, 1]} : vector<27x256xf32> to vector<1x256xf32>
    %220 = vector.broadcast %219 : vector<1x256xf32> to vector<8x256xf32>
    %221 = arith.mulf %161, %220 : vector<8x256xf32>
    %222 = arith.addf %210, %221 : vector<8x256xf32>
    %223 = vector.extract_strided_slice %163 {offsets = [13, 0], sizes = [1, 256], strides = [1, 1]} : vector<27x256xf32> to vector<1x256xf32>
    %224 = vector.broadcast %223 : vector<1x256xf32> to vector<8x256xf32>
    %225 = arith.mulf %161, %224 : vector<8x256xf32>
    %226 = arith.addf %214, %225 : vector<8x256xf32>
    %227 = vector.extract_strided_slice %163 {offsets = [22, 0], sizes = [1, 256], strides = [1, 1]} : vector<27x256xf32> to vector<1x256xf32>
    %228 = vector.broadcast %227 : vector<1x256xf32> to vector<8x256xf32>
    %229 = arith.mulf %161, %228 : vector<8x256xf32>
    %230 = arith.addf %218, %229 : vector<8x256xf32>
    %c252_i32_30 = arith.constant 252 : i32
    %231 = tpu.dynamic_rotate %161 by %c252_i32_30 dim 1 : vector<8x256xf32>, i32 -> vector<8x256xf32>
    %232 = vector.extract_strided_slice %163 {offsets = [5, 0], sizes = [1, 256], strides = [1, 1]} : vector<27x256xf32> to vector<1x256xf32>
    %233 = vector.broadcast %232 : vector<1x256xf32> to vector<8x256xf32>
    %234 = arith.mulf %231, %233 : vector<8x256xf32>
    %235 = arith.addf %222, %234 : vector<8x256xf32>
    %236 = vector.extract_strided_slice %163 {offsets = [14, 0], sizes = [1, 256], strides = [1, 1]} : vector<27x256xf32> to vector<1x256xf32>
    %237 = vector.broadcast %236 : vector<1x256xf32> to vector<8x256xf32>
    %238 = arith.mulf %231, %237 : vector<8x256xf32>
    %239 = arith.addf %226, %238 : vector<8x256xf32>
    %240 = vector.extract_strided_slice %163 {offsets = [23, 0], sizes = [1, 256], strides = [1, 1]} : vector<27x256xf32> to vector<1x256xf32>
    %241 = vector.broadcast %240 : vector<1x256xf32> to vector<8x256xf32>
    %242 = arith.mulf %231, %241 : vector<8x256xf32>
    %243 = arith.addf %230, %242 : vector<8x256xf32>
    %c228_i32_31 = arith.constant 228 : i32
    %244 = tpu.dynamic_rotate %161 by %c228_i32_31 dim 1 : vector<8x256xf32>, i32 -> vector<8x256xf32>
    %245 = vector.extract_strided_slice %163 {offsets = [6, 0], sizes = [1, 256], strides = [1, 1]} : vector<27x256xf32> to vector<1x256xf32>
    %246 = vector.broadcast %245 : vector<1x256xf32> to vector<8x256xf32>
    %247 = arith.mulf %244, %246 : vector<8x256xf32>
    %248 = arith.addf %235, %247 : vector<8x256xf32>
    %249 = vector.extract_strided_slice %163 {offsets = [15, 0], sizes = [1, 256], strides = [1, 1]} : vector<27x256xf32> to vector<1x256xf32>
    %250 = vector.broadcast %249 : vector<1x256xf32> to vector<8x256xf32>
    %251 = arith.mulf %244, %250 : vector<8x256xf32>
    %252 = arith.addf %239, %251 : vector<8x256xf32>
    %253 = vector.extract_strided_slice %163 {offsets = [24, 0], sizes = [1, 256], strides = [1, 1]} : vector<27x256xf32> to vector<1x256xf32>
    %254 = vector.broadcast %253 : vector<1x256xf32> to vector<8x256xf32>
    %255 = arith.mulf %244, %254 : vector<8x256xf32>
    %256 = arith.addf %243, %255 : vector<8x256xf32>
    %c224_i32_32 = arith.constant 224 : i32
    %257 = tpu.dynamic_rotate %161 by %c224_i32_32 dim 1 : vector<8x256xf32>, i32 -> vector<8x256xf32>
    %258 = vector.extract_strided_slice %163 {offsets = [7, 0], sizes = [1, 256], strides = [1, 1]} : vector<27x256xf32> to vector<1x256xf32>
    %259 = vector.broadcast %258 : vector<1x256xf32> to vector<8x256xf32>
    %260 = arith.mulf %257, %259 : vector<8x256xf32>
    %261 = arith.addf %248, %260 : vector<8x256xf32>
    %262 = vector.extract_strided_slice %163 {offsets = [16, 0], sizes = [1, 256], strides = [1, 1]} : vector<27x256xf32> to vector<1x256xf32>
    %263 = vector.broadcast %262 : vector<1x256xf32> to vector<8x256xf32>
    %264 = arith.mulf %257, %263 : vector<8x256xf32>
    %265 = arith.addf %252, %264 : vector<8x256xf32>
    %266 = vector.extract_strided_slice %163 {offsets = [25, 0], sizes = [1, 256], strides = [1, 1]} : vector<27x256xf32> to vector<1x256xf32>
    %267 = vector.broadcast %266 : vector<1x256xf32> to vector<8x256xf32>
    %268 = arith.mulf %257, %267 : vector<8x256xf32>
    %269 = arith.addf %256, %268 : vector<8x256xf32>
    %c220_i32_33 = arith.constant 220 : i32
    %270 = tpu.dynamic_rotate %161 by %c220_i32_33 dim 1 : vector<8x256xf32>, i32 -> vector<8x256xf32>
    %271 = vector.extract_strided_slice %163 {offsets = [8, 0], sizes = [1, 256], strides = [1, 1]} : vector<27x256xf32> to vector<1x256xf32>
    %272 = vector.broadcast %271 : vector<1x256xf32> to vector<8x256xf32>
    %273 = arith.mulf %270, %272 : vector<8x256xf32>
    %274 = arith.addf %261, %273 : vector<8x256xf32>
    %275 = vector.extract_strided_slice %163 {offsets = [17, 0], sizes = [1, 256], strides = [1, 1]} : vector<27x256xf32> to vector<1x256xf32>
    %276 = vector.broadcast %275 : vector<1x256xf32> to vector<8x256xf32>
    %277 = arith.mulf %270, %276 : vector<8x256xf32>
    %278 = arith.addf %265, %277 : vector<8x256xf32>
    %279 = vector.extract_strided_slice %163 {offsets = [26, 0], sizes = [1, 256], strides = [1, 1]} : vector<27x256xf32> to vector<1x256xf32>
    %280 = vector.broadcast %279 : vector<1x256xf32> to vector<8x256xf32>
    %281 = arith.mulf %270, %280 : vector<8x256xf32>
    %282 = arith.addf %269, %281 : vector<8x256xf32>
    %283 = vector.extract_strided_slice %274 {offsets = [0, 0], sizes = [7, 256], strides = [1, 1]} : vector<8x256xf32> to vector<7x256xf32>
    %284 = tpu.concatenate %3, %283 in 0 : vector<1x256xf32>, vector<7x256xf32> -> vector<8x256xf32>
    %285 = vector.extract_strided_slice %282 {offsets = [1, 0], sizes = [7, 256], strides = [1, 1]} : vector<8x256xf32> to vector<7x256xf32>
    %286 = tpu.concatenate %285, %3 in 0 : vector<7x256xf32>, vector<1x256xf32> -> vector<8x256xf32>
    %287 = arith.addf %278, %284 : vector<8x256xf32>
    %288 = arith.addf %287, %286 : vector<8x256xf32>
    %c4 = arith.constant 4 : index
    %c0_34 = arith.constant 0 : index
    %289 = vector.load %arg3[%c4, %c0_34] : memref<8x256xf32, #tpu.memory_space<vmem>>, vector<1x256xf32>
    %290 = vector.broadcast %289 : vector<1x256xf32> to vector<8x256xf32>
    %291 = arith.addf %288, %290 : vector<8x256xf32>
    %292 = arith.mulf %291, %291 : vector<8x256xf32>
    %293 = tpu.concatenate %291, %292 in 0 : vector<8x256xf32>, vector<8x256xf32> -> vector<16x256xf32>
    %cst_35 = arith.constant dense<0.000000e+00> : vector<16x256xf32>
    %294 = tpu.matmul %293, %2, %cst_35 {dimension_numbers = #tpu.dot_dimension_numbers<[1], [0], [0], [1], [0, 0, 1, 1], [], []>} : vector<16x256xf32>, vector<256x256xf32>, vector<16x256xf32> -> vector<16x256xf32>
    %cst_36 = arith.constant 2.500000e-01 : f32
    %295 = vector.broadcast %cst_36 : f32 to vector<16x256xf32>
    %296 = arith.mulf %294, %295 : vector<16x256xf32>
    %297 = vector.extract_strided_slice %296 {offsets = [0, 0], sizes = [8, 256], strides = [1, 1]} : vector<16x256xf32> to vector<8x256xf32>
    %298 = vector.extract_strided_slice %296 {offsets = [8, 0], sizes = [8, 256], strides = [1, 1]} : vector<16x256xf32> to vector<8x256xf32>
    %299 = arith.mulf %297, %297 : vector<8x256xf32>
    %300 = arith.subf %298, %299 : vector<8x256xf32>
    %301 = arith.subf %291, %297 : vector<8x256xf32>
    %cst_37 = arith.constant 9.99999974E-6 : f32
    %302 = vector.broadcast %cst_37 : f32 to vector<8x256xf32>
    %303 = arith.addf %300, %302 : vector<8x256xf32>
    %304 = math.rsqrt %303 : vector<8x256xf32>
    %305 = arith.mulf %301, %304 : vector<8x256xf32>
    %c5 = arith.constant 5 : index
    %c0_38 = arith.constant 0 : index
    %306 = vector.load %arg3[%c5, %c0_38] : memref<8x256xf32, #tpu.memory_space<vmem>>, vector<1x256xf32>
    %307 = vector.broadcast %306 : vector<1x256xf32> to vector<8x256xf32>
    %308 = arith.mulf %305, %307 : vector<8x256xf32>
    %c6 = arith.constant 6 : index
    %c0_39 = arith.constant 0 : index
    %309 = vector.load %arg3[%c6, %c0_39] : memref<8x256xf32, #tpu.memory_space<vmem>>, vector<1x256xf32>
    %310 = vector.broadcast %309 : vector<1x256xf32> to vector<8x256xf32>
    %311 = arith.addf %308, %310 : vector<8x256xf32>
    %c7 = arith.constant 7 : index
    %c0_40 = arith.constant 0 : index
    %312 = vector.load %arg3[%c7, %c0_40] : memref<8x256xf32, #tpu.memory_space<vmem>>, vector<1x256xf32>
    %cst_41 = arith.constant 0.000000e+00 : f32
    %313 = vector.broadcast %cst_41 : f32 to vector<8x256xf32>
    %314 = arith.maximumf %311, %313 : vector<8x256xf32>
    %cst_42 = arith.constant 0.000000e+00 : f32
    %315 = vector.broadcast %cst_42 : f32 to vector<8x256xf32>
    %316 = arith.minimumf %311, %315 : vector<8x256xf32>
    %317 = vector.broadcast %312 : vector<1x256xf32> to vector<8x256xf32>
    %318 = arith.mulf %317, %316 : vector<8x256xf32>
    %319 = arith.addf %314, %318 : vector<8x256xf32>
    %320 = arith.mulf %319, %1 : vector<8x256xf32>
    %c0_43 = arith.constant 0 : index
    %c0_44 = arith.constant 0 : index
    %c0_45 = arith.constant 0 : index
    %321 = vector.load %arg5[%c0_43, %c0_44, %c0_45] : memref<1x8x256xf32, #tpu.memory_space<vmem>>, vector<1x8x256xf32>
    %322 = vector.shape_cast %321 : vector<1x8x256xf32> to vector<8x256xf32>
    %323 = vector.shape_cast %320 : vector<8x256xf32> to vector<1x8x256xf32>
    tpu.vector_store %arg5[%c0_43, %c0_44, %c0_45], %323 {strides = array<i32>} : memref<1x8x256xf32, #tpu.memory_space<vmem>>, vector<1x8x256xf32>,
    return
  }
  func.func @transform_0(%arg0: i32) -> (i32, i32, i32) {
    %c0_i32 = arith.constant 0 : i32
    %c0_i32_0 = arith.constant 0 : i32
    %c0_i32_1 = arith.constant 0 : i32
    return %arg0, %c0_i32, %c0_i32_0 : i32, i32, i32
  }
  func.func @transform_1(%arg0: i32) -> (i32, i32, i32) {
    %c0_i32 = arith.constant 0 : i32
    %c0_i32_0 = arith.constant 0 : i32
    %c0_i32_1 = arith.constant 0 : i32
    %c0_i32_2 = arith.constant 0 : i32
    return %c0_i32, %c0_i32_0, %c0_i32_1 : i32, i32, i32
  }
  func.func @transform_2(%arg0: i32) -> (i32, i32) {
    %c0_i32 = arith.constant 0 : i32
    %c0_i32_0 = arith.constant 0 : i32
    %c0_i32_1 = arith.constant 0 : i32
    return %c0_i32, %c0_i32_0 : i32, i32
  }
  func.func @transform_3(%arg0: i32) -> (i32, i32) {
    %c0_i32 = arith.constant 0 : i32
    %c0_i32_0 = arith.constant 0 : i32
    %c0_i32_1 = arith.constant 0 : i32
    return %c0_i32, %c0_i32_0 : i32, i32
  }
  func.func @transform_4(%arg0: i32) -> (i32, i32, i32) {
    %c0_i32 = arith.constant 0 : i32
    %c0_i32_0 = arith.constant 0 : i32
    %c0_i32_1 = arith.constant 0 : i32
    return %arg0, %c0_i32, %c0_i32_0 : i32, i32, i32
  }
}

</mosaic_0001>

<llo_original>
// kernel: tpu_custom_call.1
$region0: #{tpu_custom_call.1}
  #allocation0 [shape = 'u32[]', space=smem, size = 0x4, offset = 0x4, fixed_abs, tag = 'smem constant byte address 0x4 - core index']
  #allocation1 [shape = 'u32[144,128]{1,0:T(1,128)}', space=vmem, size = 0x12000, scoped, tag = 'internal scratch']
  %s0 = inlined_call_operand.vmem [shape: f32[2,8,256], index: 0, kind: input, shape index: {}]
  %s1 = inlined_call_operand.vmem [shape: f32[2,27,256], index: 1, kind: input, shape index: {}]
  %s2 = inlined_call_operand.vmem [shape: f32[8,256], index: 2, kind: input, shape index: {}]
  %s3 = inlined_call_operand.hbm [shape: f32[256,256], index: 3, kind: input, shape index: {}]
  %s4 = inlined_call_operand.hbm [shape: f32[2,8,256], index: 4, kind: output, shape index: {}]
  %s5 = sld [smem:[#allocation0]]
  $region53: #{tpu_custom_call.1} parent=0
    _
  %s7 = ssub.s32 1, %s5
  %s8 = scalar_select 0, %s7, %s5
  $region1: #{tpu_custom_call.1} parent=0
    #allocation2 [shape = 'u8[262144]{0}', space=vmem, size = 0x40000, scoped, tag = 'input window, operand 3, single buffered']
    #allocation3 [shape = 's32[2]{0}', space=sflag, size = 0x8, scoped, tag = 'scoped memory for tpu_custom_call.1']
    #allocation4 [shape = 's32[2]{0}', space=sflag, size = 0x8, scoped, tag = 'scoped memory for tpu_custom_call.1']
    #allocation5 [shape = 'u8[16384]{0}', space=vmem, size = 0x4000, scoped, tag = 'output window, operand 0']
    %9 = vsyncpa [#allocation3], 0
    %10 = vsyncpa [#allocation4], 0
    %s11 = scalar_lea.sflag [#allocation4], 1
    %12 = vsyncpa %s11, 0
    loop: start=0, step=1, limit=4
    $region2: #{tpu_custom_call.1} parent=1 // loop_pre_header
      _
    $region3: #{tpu_custom_call.1} parent=1 // loop_header
      %s14 = sphi 0, %s18
      %p15 = scmp.ge.s32.totalorder %s14, 4
      %s24 = sphi 0, %s26
      %s27 = sphi 0, %s24
      %s28 = sphi 0, %s27
      %s44 = sphi 0, %s28
      %s48 = sphi 0, %s48
      %s50 = sphi 0, %s48
      %s51 = sphi 0, %s50
      %s65 = sphi 0, %s51
      %s69 = sphi 0, %s69
      %s71 = sphi 0, %s69
      %s72 = sphi 0, %s71
      %s86 = sphi 0, %s72
      %s90 = sphi 0, %s90
      %s92 = sphi 0, %s90
      %s93 = sphi 0, %s92
      %s107 = sphi 0, %s93
      %s113 = sphi 0, %s115
      %s116 = sphi 0, %s113
      %s117 = sphi 0, %s116
      %s133 = sphi 0, %s117
    $region4: #{tpu_custom_call.1} parent=1 // loop_header_branch
      %17 = sbr.rel (%p15) target = $region8
    $region5: #{tpu_custom_call.1} parent=1 // loop_body
      %s19 = ssub.s32 %s14, 1
      %s20 = ssub.s32 %s14, 2
      %s21 = sadd.s32 %s14, 1
      %s22 = ssub.s32 %s14, %s21
      %p23 = scmp.eq.s32.totalorder %s22, 0
      %s25 = sadd.s32 %s24, 1
      %s26 = scalar_select %p23, %s24, %s25
      %p29 = pneg %p23
      %p30 = scmp.eq.s32.totalorder %s14, 1
      %p31 = por %p29, %p30
      %p32 = scmp.ne.s32.totalorder %s24, %s27
      %p33 = scmp.eq.s32.totalorder %s14, 0
      %p34 = por %p32, %p33
      %p35 = scmp.ne.s32.totalorder %s24, %s27
      %p36 = scmp.eq.s32.totalorder %s19, 1
      %p37 = por %p35, %p36
      %p38 = scmp.ne.s32.totalorder %s27, %s28
      %p39 = scmp.eq.s32.totalorder %s19, 0
      %p40 = por %p38, %p39
      %p41 = scmp.ne.s32.totalorder %s27, %s28
      %p42 = scmp.eq.s32.totalorder %s20, 1
      %p43 = por %p41, %p42
      %p45 = scmp.ne.s32.totalorder %s28, %s44
      %p46 = scmp.eq.s32.totalorder %s20, 0
      %p47 = por %p45, %p46
      %s49 = sadd.s32 %s48, 1
      %p52 = scmp.eq.s32.totalorder %s14, 1
      %p53 = scmp.ne.s32.totalorder %s48, %s50
      %p54 = scmp.eq.s32.totalorder %s14, 0
      %p55 = por %p53, %p54
      %p56 = scmp.ne.s32.totalorder %s48, %s50
      %p57 = scmp.eq.s32.totalorder %s19, 1
      %p58 = por %p56, %p57
      %p59 = scmp.ne.s32.totalorder %s50, %s51
      %p60 = scmp.eq.s32.totalorder %s19, 0
      %p61 = por %p59, %p60
      %p62 = scmp.ne.s32.totalorder %s50, %s51
      %p63 = scmp.eq.s32.totalorder %s20, 1
      %p64 = por %p62, %p63
      %p66 = scmp.ne.s32.totalorder %s51, %s65
      %p67 = scmp.eq.s32.totalorder %s20, 0
      %p68 = por %p66, %p67
      %s70 = sadd.s32 %s69, 1
      %p73 = scmp.eq.s32.totalorder %s14, 1
      %p74 = scmp.ne.s32.totalorder %s69, %s71
      %p75 = scmp.eq.s32.totalorder %s14, 0
      %p76 = por %p74, %p75
      %p77 = scmp.ne.s32.totalorder %s69, %s71
      %p78 = scmp.eq.s32.totalorder %s19, 1
      %p79 = por %p77, %p78
      %p80 = scmp.ne.s32.totalorder %s71, %s72
      %p81 = scmp.eq.s32.totalorder %s19, 0
      %p82 = por %p80, %p81
      %p83 = scmp.ne.s32.totalorder %s71, %s72
      %p84 = scmp.eq.s32.totalorder %s20, 1
      %p85 = por %p83, %p84
      %p87 = scmp.ne.s32.totalorder %s72, %s86
      %p88 = scmp.eq.s32.totalorder %s20, 0
      %p89 = por %p87, %p88
      %s91 = sadd.s32 %s90, 1
      %p94 = scmp.eq.s32.totalorder %s14, 1
      %p95 = scmp.ne.s32.totalorder %s90, %s92
      %p96 = scmp.eq.s32.totalorder %s14, 0
      %p97 = por %p95, %p96
      %p98 = scmp.ne.s32.totalorder %s90, %s92
      %p99 = scmp.eq.s32.totalorder %s19, 1
      %p100 = por %p98, %p99
      %p101 = scmp.ne.s32.totalorder %s92, %s93
      %p102 = scmp.eq.s32.totalorder %s19, 0
      %p103 = por %p101, %p102
      %p104 = scmp.ne.s32.totalorder %s92, %s93
      %p105 = scmp.eq.s32.totalorder %s20, 1
      %p106 = por %p104, %p105
      %p108 = scmp.ne.s32.totalorder %s93, %s107
      %p109 = scmp.eq.s32.totalorder %s20, 0
      %p110 = por %p108, %p109
      %s111 = ssub.s32 %s14, %s21
      %p112 = scmp.eq.s32.totalorder %s111, 0
      %s114 = sadd.s32 %s113, 1
      %s115 = scalar_select %p112, %s113, %s114
      %p118 = pneg %p112
      %p119 = scmp.eq.s32.totalorder %s14, 1
      %p120 = por %p118, %p119
      %p121 = scmp.ne.s32.totalorder %s113, %s116
      %p122 = scmp.eq.s32.totalorder %s14, 0
      %p123 = por %p121, %p122
      %p124 = scmp.ne.s32.totalorder %s113, %s116
      %p125 = scmp.eq.s32.totalorder %s19, 1
      %p126 = por %p124, %p125
      %p127 = scmp.ne.s32.totalorder %s116, %s117
      %p128 = scmp.eq.s32.totalorder %s19, 0
      %p129 = por %p127, %p128
      %p130 = scmp.ne.s32.totalorder %s116, %s117
      %p131 = scmp.eq.s32.totalorder %s20, 1
      %p132 = por %p130, %p131
      %p134 = scmp.ne.s32.totalorder %s117, %s133
      %p135 = scmp.eq.s32.totalorder %s20, 0
      %p136 = por %p134, %p135
      %p137 = scmp.le.s32.totalorder 1, %s14
      %p138 = scmp.lt.s32.totalorder %s14, 3
      %p139 = pnand %p137, %p138
      %p140 = pneg %p139
      // Predicated region
      $region9: #{tpu_custom_call.1} parent=5 // pred_check
        _
      $region10: #{tpu_custom_call.1} parent=5 // pred_check_branch
        %142 = sbr.rel (%p139) target = $region12
      $region11: #{tpu_custom_call.1} parent=5 // pred_region
        %s143 = ssub.s32 %s14, 1
        // Predicated region
        $region13: #{tpu_custom_call.1} parent=11 // pred_check
          %p144 = pneg %p61
        $region14: #{tpu_custom_call.1} parent=11 // pred_check_branch
          %146 = sbr.rel (%p144) target = $region16
        $region15: #{tpu_custom_call.1} parent=11 // pred_region
          _
        $region16: #{tpu_custom_call.1} parent=11 // pred_fallthru
          _
        // Predicated region
        $region17: #{tpu_custom_call.1} parent=11 // pred_check
          %p147 = pneg %p82
        $region18: #{tpu_custom_call.1} parent=11 // pred_check_branch
          %149 = sbr.rel (%p147) target = $region20
        $region19: #{tpu_custom_call.1} parent=11 // pred_region
          _
        $region20: #{tpu_custom_call.1} parent=11 // pred_fallthru
          _
        // Predicated region
        $region21: #{tpu_custom_call.1} parent=11 // pred_check
          %p150 = pneg %p103
        $region22: #{tpu_custom_call.1} parent=11 // pred_check_branch
          %152 = sbr.rel (%p150) target = $region24
        $region23: #{tpu_custom_call.1} parent=11 // pred_region
          %s154 = ssub.s32 8192, 8192
          %155 = vsyncadd [#allocation3], %s154
          %s156 = sshll.u32 [#allocation2], 4
          %s157 = int_to_ptr.vmem [resolvable:$true] %s156
          %162 = dma.hbm_to_vmem [thread:$0]  %s3, 8192, %s157, [#allocation3], 256, 256, 16
        $region24: #{tpu_custom_call.1} parent=11 // pred_fallthru
          _
      $region12: #{tpu_custom_call.1} parent=5 // pred_fallthru
        _
      %p163 = scmp.lt.s32.totalorder %s14, 2
      // Predicated region
      $region25: #{tpu_custom_call.1} parent=5 // pred_check
        %p164 = pneg %p163
      $region26: #{tpu_custom_call.1} parent=5 // pred_check_branch
        %166 = sbr.rel (%p164) target = $region28
      $region27: #{tpu_custom_call.1} parent=5 // pred_region
        // Predicated region
        $region29: #{tpu_custom_call.1} parent=27 // pred_check
          %p167 = pneg %p34
        $region30: #{tpu_custom_call.1} parent=27 // pred_check_branch
          %169 = sbr.rel (%p167) target = $region32
        $region31: #{tpu_custom_call.1} parent=27 // pred_region
          %p170 = scmp.lt.s32.totalorder %s14, 1
          %s171 = scalar_select %p170, %s14, 1
          %s172 = smul.addr %s171, 2
          %s173 = smul.addr %s172, 8
          %s174 = scalar_lea.vmem %s0, %s173
        $region32: #{tpu_custom_call.1} parent=27 // pred_fallthru
          _
      $region28: #{tpu_custom_call.1} parent=5 // pred_fallthru
        _
      %p175 = scmp.le.s32.totalorder 1, %s14
      %p176 = scmp.lt.s32.totalorder %s14, 3
      %p177 = pnand %p175, %p176
      %p178 = pneg %p177
      // Predicated region
      $region33: #{tpu_custom_call.1} parent=5 // pred_check
        _
      $region34: #{tpu_custom_call.1} parent=5 // pred_check_branch
        %180 = sbr.rel (%p177) target = $region36
      $region35: #{tpu_custom_call.1} parent=5 // pred_region
        %s181 = ssub.s32 %s14, 1
        // Predicated region
        $region37: #{tpu_custom_call.1} parent=35 // pred_check
          %p182 = pneg %p103
        $region38: #{tpu_custom_call.1} parent=35 // pred_check_branch
          %184 = sbr.rel (%p182) target = $region40
        $region39: #{tpu_custom_call.1} parent=35 // pred_region
          %185 = dma.done [#allocation3], 8192
        $region40: #{tpu_custom_call.1} parent=35 // pred_fallthru
          _
        %p186 = scmp.lt.s32.totalorder %s19, 1
        %s187 = scalar_select %p186, %s19, 1
        %s188 = smul.addr %s187, 2
        %s189 = smul.addr %s188, 8
        %s190 = scalar_lea.vmem %s0, %s189
        %p191 = pneg %p40
        %p192 = pneg %p37
        %p193 = pneg %p61
        %p194 = pneg %p58
        %p195 = pneg %p82
        %p196 = pneg %p79
        %p197 = pneg %p103
        %p198 = pneg %p100
        %p199 = pneg %p129
        %p200 = pneg %p126
        %s201 = sand.u32 %s116, 1
        %s202 = scalar_lea.sflag [#allocation4], %s201
        %s203 = sand.u32 %s116, 1
        %s204 = smul.addr %s203, 16
        %s205 = scalar_lea.vmem [#allocation5], %s204
        %p206 = scmp.lt.s32.totalorder %s19, 1
        %s207 = scalar_select %p206, %s19, 1
        %s208 = smul.addr %s207, 2
        %s209 = smul.addr %s208, 8
        %s210 = scalar_lea.vmem %s0, %s209
        %v211 = vld [vmem:[%s210] sm:$0xff]
        %v212 = vld [vmem:[%s210 + $0x8] sm:$0xff]
        %v213 = vld [vmem:[#allocation2] sm:$0xff]
        %v214 = vld [vmem:[#allocation2 + $0x8] sm:$0xff]
        %v215 = vld [vmem:[#allocation2 + $0x10] sm:$0xff]
        %v216 = vld [vmem:[#allocation2 + $0x18] sm:$0xff]
        %v217 = vld [vmem:[#allocation2 + $0x20] sm:$0xff]
        %v218 = vld [vmem:[#allocation2 + $0x28] sm:$0xff]
        %v219 = vld [vmem:[#allocation2 + $0x30] sm:$0xff]
        %v220 = vld [vmem:[#allocation2 + $0x38] sm:$0xff]
        %v221 = vld [vmem:[#allocation2 + $0x40] sm:$0xff]
        %v222 = vld [vmem:[#allocation2 + $0x48] sm:$0xff]
        %v223 = vld [vmem:[#allocation2 + $0x50] sm:$0xff]
        %v224 = vld [vmem:[#allocation2 + $0x58] sm:$0xff]
        %v225 = vld [vmem:[#allocation2 + $0x60] sm:$0xff]
        %v226 = vld [vmem:[#allocation2 + $0x68] sm:$0xff]
        %v227 = vld [vmem:[#allocation2 + $0x70] sm:$0xff]
        %v228 = vld [vmem:[#allocation2 + $0x78] sm:$0xff]
        %v229 = vld [vmem:[#allocation2 + $0x80] sm:$0xff]
        %v230 = vld [vmem:[#allocation2 + $0x88] sm:$0xff]
        %v231 = vld [vmem:[#allocation2 + $0x90] sm:$0xff]
        %v232 = vld [vmem:[#allocation2 + $0x98] sm:$0xff]
        %v233 = vld [vmem:[#allocation2 + $0xa0] sm:$0xff]
        %v234 = vld [vmem:[#allocation2 + $0xa8] sm:$0xff]
        %v235 = vld [vmem:[#allocation2 + $0xb0] sm:$0xff]
        %v236 = vld [vmem:[#allocation2 + $0xb8] sm:$0xff]
        %v237 = vld [vmem:[#allocation2 + $0xc0] sm:$0xff]
        %v238 = vld [vmem:[#allocation2 + $0xc8] sm:$0xff]
        %v239 = vld [vmem:[#allocation2 + $0xd0] sm:$0xff]
        %v240 = vld [vmem:[#allocation2 + $0xd8] sm:$0xff]
        %v241 = vld [vmem:[#allocation2 + $0xe0] sm:$0xff]
        %v242 = vld [vmem:[#allocation2 + $0xe8] sm:$0xff]
        %v243 = vld [vmem:[#allocation2 + $0xf0] sm:$0xff]
        %v244 = vld [vmem:[#allocation2 + $0xf8] sm:$0xff]
        %v245 = vld [vmem:[#allocation2 + $0x100] sm:$0xff]
        %v246 = vld [vmem:[#allocation2 + $0x108] sm:$0xff]
        %v247 = vld [vmem:[#allocation2 + $0x110] sm:$0xff]
        %v248 = vld [vmem:[#allocation2 + $0x118] sm:$0xff]
        %v249 = vld [vmem:[#allocation2 + $0x120] sm:$0xff]
        %v250 = vld [vmem:[#allocation2 + $0x128] sm:$0xff]
        %v251 = vld [vmem:[#allocation2 + $0x130] sm:$0xff]
        %v252 = vld [vmem:[#allocation2 + $0x138] sm:$0xff]
        %v253 = vld [vmem:[#allocation2 + $0x140] sm:$0xff]
        %v254 = vld [vmem:[#allocation2 + $0x148] sm:$0xff]
        %v255 = vld [vmem:[#allocation2 + $0x150] sm:$0xff]
        %v256 = vld [vmem:[#allocation2 + $0x158] sm:$0xff]
        %v257 = vld [vmem:[#allocation2 + $0x160] sm:$0xff]
        %v258 = vld [vmem:[#allocation2 + $0x168] sm:$0xff]
        %v259 = vld [vmem:[#allocation2 + $0x170] sm:$0xff]
        %v260 = vld [vmem:[#allocation2 + $0x178] sm:$0xff]
        %v261 = vld [vmem:[#allocation2 + $0x180] sm:$0xff]
        %v262 = vld [vmem:[#allocation2 + $0x188] sm:$0xff]
        %v263 = vld [vmem:[#allocation2 + $0x190] sm:$0xff]
        %v264 = vld [vmem:[#allocation2 + $0x198] sm:$0xff]
        %v265 = vld [vmem:[#allocation2 + $0x1a0] sm:$0xff]
        %v266 = vld [vmem:[#allocation2 + $0x1a8] sm:$0xff]
        %v267 = vld [vmem:[#allocation2 + $0x1b0] sm:$0xff]
        %v268 = vld [vmem:[#allocation2 + $0x1b8] sm:$0xff]
        %v269 = vld [vmem:[#allocation2 + $0x1c0] sm:$0xff]
        %v270 = vld [vmem:[#allocation2 + $0x1c8] sm:$0xff]
        %v271 = vld [vmem:[#allocation2 + $0x1d0] sm:$0xff]
        %v272 = vld [vmem:[#allocation2 + $0x1d8] sm:$0xff]
        %v273 = vld [vmem:[#allocation2 + $0x1e0] sm:$0xff]
        %v274 = vld [vmem:[#allocation2 + $0x1e8] sm:$0xff]
        %v275 = vld [vmem:[#allocation2 + $0x1f0] sm:$0xff]
        %v276 = vld [vmem:[#allocation2 + $0x1f8] sm:$0xff]
        %v277 = vld [vmem:[%s1] sm:$0xff]
        %v278 = vld [vmem:[%s1 + $0x8] sm:$0xff]
        %v279 = vld [vmem:[%s1 + $0x10] sm:$0xff]
        %v280 = vld [vmem:[%s1 + $0x18] sm:$0xff]
        %v281 = vld [vmem:[%s1 + $0x20] sm:$0xff]
        %v282 = vld [vmem:[%s1 + $0x28] sm:$0xff]
        %v283 = vld [vmem:[%s1 + $0x30] sm:$0x7]
        %v284 = vld [vmem:[%s1 + $0x38] sm:$0x7]
        %285 = vrot.lane.b32.xlu0 %v211, 36
        %v286 = vpop.permute.xlu0 %285
        %287 = vrot.lane.b32.xlu0 %v212, 36
        %v288 = vpop.permute.xlu0 %287
        %v289 = vlaneseq
        %v290 = vand.u32 %v289, 127
        %vm291 = vcmp.lt.s32.totalorder %v290, 36
        %v292 = vsel %vm291, %v286, %v288
        %v293 = vsel %vm291, %v288, %v286
        %v294 = vlaneseq
        %v295 = vshrl.u32 %v294, 7
        %v296 = vsub.s32 0, %v295
        %v297 = vrot.slane %v277, %v296
        %v298 = vlaneseq
        %v299 = vshrl.u32 %v298, 7
        %v300 = vsub.s32 0, %v299
        %v301 = vrot.slane %v278, %v300
        %v302 = vmul.f32 %v293, %v297
        %v303 = vmul.f32 %v292, %v301
        %v304 = vadd.f32 %v302, 0.0
        %v305 = vadd.f32 %v303, 0.0
        %v306 = vlaneseq
        %v307 = vshrl.u32 %v306, 7
        %v308 = vsub.s32 1, %v307
        %v309 = vrot.slane %v279, %v308
        %v310 = vlaneseq
        %v311 = vshrl.u32 %v310, 7
        %v312 = vsub.s32 1, %v311
        %v313 = vrot.slane %v280, %v312
        %v314 = vmul.f32 %v293, %v309
        %v315 = vmul.f32 %v292, %v313
        %v316 = vadd.f32 %v314, 0.0
        %v317 = vadd.f32 %v315, 0.0
        %v318 = vlaneseq
        %v319 = vshrl.u32 %v318, 7
        %v320 = vsub.s32 2, %v319
        %v321 = vrot.slane %v281, %v320
        %v322 = vlaneseq
        %v323 = vshrl.u32 %v322, 7
        %v324 = vsub.s32 2, %v323
        %v325 = vrot.slane %v282, %v324
        %v326 = vmul.f32 %v293, %v321
        %v327 = vmul.f32 %v292, %v325
        %v328 = vadd.f32 %v326, 0.0
        %v329 = vadd.f32 %v327, 0.0
        %330 = vrot.lane.b32.xlu0 %v211, 32
        %v331 = vpop.permute.xlu0 %330
        %332 = vrot.lane.b32.xlu0 %v212, 32
        %v333 = vpop.permute.xlu0 %332
        %vm334 = vcmp.lt.s32.totalorder %v290, 32
        %v335 = vsel %vm334, %v331, %v333
        %v336 = vsel %vm334, %v333, %v331
        %v337 = vlaneseq
        %v338 = vshrl.u32 %v337, 7
        %v339 = vsub.s32 1, %v338
        %v340 = vrot.slane %v277, %v339
        %v341 = vlaneseq
        %v342 = vshrl.u32 %v341, 7
        %v343 = vsub.s32 1, %v342
        %v344 = vrot.slane %v278, %v343
        %v345 = vmul.f32 %v336, %v340
        %v346 = vmul.f32 %v335, %v344
        %v347 = vadd.f32 %v304, %v345
        %v348 = vadd.f32 %v305, %v346
        %v349 = vlaneseq
        %v350 = vshrl.u32 %v349, 7
        %v351 = vsub.s32 2, %v350
        %v352 = vrot.slane %v279, %v351
        %v353 = vlaneseq
        %v354 = vshrl.u32 %v353, 7
        %v355 = vsub.s32 2, %v354
        %v356 = vrot.slane %v280, %v355
        %v357 = vmul.f32 %v336, %v352
        %v358 = vmul.f32 %v335, %v356
        %v359 = vadd.f32 %v316, %v357
        %v360 = vadd.f32 %v317, %v358
        %v361 = vlaneseq
        %v362 = vshrl.u32 %v361, 7
        %v363 = vsub.s32 3, %v362
        %v364 = vrot.slane %v281, %v363
        %v365 = vlaneseq
        %v366 = vshrl.u32 %v365, 7
        %v367 = vsub.s32 3, %v366
        %v368 = vrot.slane %v282, %v367
        %v369 = vmul.f32 %v336, %v364
        %v370 = vmul.f32 %v335, %v368
        %v371 = vadd.f32 %v328, %v369
        %v372 = vadd.f32 %v329, %v370
        %373 = vrot.lane.b32.xlu0 %v211, 28
        %v374 = vpop.permute.xlu0 %373
        %375 = vrot.lane.b32.xlu0 %v212, 28
        %v376 = vpop.permute.xlu0 %375
        %vm377 = vcmp.lt.s32.totalorder %v290, 28
        %v378 = vsel %vm377, %v374, %v376
        %v379 = vsel %vm377, %v376, %v374
        %v380 = vlaneseq
        %v381 = vshrl.u32 %v380, 7
        %v382 = vsub.s32 2, %v381
        %v383 = vrot.slane %v277, %v382
        %v384 = vlaneseq
        %v385 = vshrl.u32 %v384, 7
        %v386 = vsub.s32 2, %v385
        %v387 = vrot.slane %v278, %v386
        %v388 = vmul.f32 %v379, %v383
        %v389 = vmul.f32 %v378, %v387
        %v390 = vadd.f32 %v347, %v388
        %v391 = vadd.f32 %v348, %v389
        %v392 = vlaneseq
        %v393 = vshrl.u32 %v392, 7
        %v394 = vsub.s32 3, %v393
        %v395 = vrot.slane %v279, %v394
        %v396 = vlaneseq
        %v397 = vshrl.u32 %v396, 7
        %v398 = vsub.s32 3, %v397
        %v399 = vrot.slane %v280, %v398
        %v400 = vmul.f32 %v379, %v395
        %v401 = vmul.f32 %v378, %v399
        %v402 = vadd.f32 %v359, %v400
        %v403 = vadd.f32 %v360, %v401
        %v404 = vlaneseq
        %v405 = vshrl.u32 %v404, 7
        %v406 = vsub.s32 4, %v405
        %v407 = vrot.slane %v281, %v406
        %v408 = vlaneseq
        %v409 = vshrl.u32 %v408, 7
        %v410 = vsub.s32 4, %v409
        %v411 = vrot.slane %v282, %v410
        %v412 = vmul.f32 %v379, %v407
        %v413 = vmul.f32 %v378, %v411
        %v414 = vadd.f32 %v371, %v412
        %v415 = vadd.f32 %v372, %v413
        %416 = vrot.lane.b32.xlu0 %v211, 4
        %v417 = vpop.permute.xlu0 %416
        %418 = vrot.lane.b32.xlu0 %v212, 4
        %v419 = vpop.permute.xlu0 %418
        %vm420 = vcmp.lt.s32.totalorder %v290, 4
        %v421 = vsel %vm420, %v417, %v419
        %v422 = vsel %vm420, %v419, %v417
        %v423 = vlaneseq
        %v424 = vshrl.u32 %v423, 7
        %v425 = vsub.s32 3, %v424
        %v426 = vrot.slane %v277, %v425
        %v427 = vlaneseq
        %v428 = vshrl.u32 %v427, 7
        %v429 = vsub.s32 3, %v428
        %v430 = vrot.slane %v278, %v429
        %v431 = vmul.f32 %v422, %v426
        %v432 = vmul.f32 %v421, %v430
        %v433 = vadd.f32 %v390, %v431
        %v434 = vadd.f32 %v391, %v432
        %v435 = vlaneseq
        %v436 = vshrl.u32 %v435, 7
        %v437 = vsub.s32 4, %v436
        %v438 = vrot.slane %v279, %v437
        %v439 = vlaneseq
        %v440 = vshrl.u32 %v439, 7
        %v441 = vsub.s32 4, %v440
        %v442 = vrot.slane %v280, %v441
        %v443 = vmul.f32 %v422, %v438
        %v444 = vmul.f32 %v421, %v442
        %v445 = vadd.f32 %v402, %v443
        %v446 = vadd.f32 %v403, %v444
        %v447 = vlaneseq
        %v448 = vshrl.u32 %v447, 7
        %v449 = vsub.s32 5, %v448
        %v450 = vrot.slane %v281, %v449
        %v451 = vlaneseq
        %v452 = vshrl.u32 %v451, 7
        %v453 = vsub.s32 5, %v452
        %v454 = vrot.slane %v282, %v453
        %v455 = vmul.f32 %v422, %v450
        %v456 = vmul.f32 %v421, %v454
        %v457 = vadd.f32 %v414, %v455
        %v458 = vadd.f32 %v415, %v456
        %v459 = vlaneseq
        %v460 = vshrl.u32 %v459, 7
        %v461 = vsub.s32 4, %v460
        %v462 = vrot.slane %v277, %v461
        %v463 = vlaneseq
        %v464 = vshrl.u32 %v463, 7
        %v465 = vsub.s32 4, %v464
        %v466 = vrot.slane %v278, %v465
        %v467 = vmul.f32 %v211, %v462
        %v468 = vmul.f32 %v212, %v466
        %v469 = vadd.f32 %v433, %v467
        %v470 = vadd.f32 %v434, %v468
        %v471 = vlaneseq
        %v472 = vshrl.u32 %v471, 7
        %v473 = vsub.s32 5, %v472
        %v474 = vrot.slane %v279, %v473
        %v475 = vlaneseq
        %v476 = vshrl.u32 %v475, 7
        %v477 = vsub.s32 5, %v476
        %v478 = vrot.slane %v280, %v477
        %v479 = vmul.f32 %v211, %v474
        %v480 = vmul.f32 %v212, %v478
        %v481 = vadd.f32 %v445, %v479
        %v482 = vadd.f32 %v446, %v480
        %v483 = vlaneseq
        %v484 = vshrl.u32 %v483, 7
        %v485 = vsub.s32 6, %v484
        %v486 = vrot.slane %v281, %v485
        %v487 = vlaneseq
        %v488 = vshrl.u32 %v487, 7
        %v489 = vsub.s32 6, %v488
        %v490 = vrot.slane %v282, %v489
        %v491 = vmul.f32 %v211, %v486
        %v492 = vmul.f32 %v212, %v490
        %v493 = vadd.f32 %v457, %v491
        %v494 = vadd.f32 %v458, %v492
        %495 = vrot.lane.b32.xlu0 %v211, 124
        %v496 = vpop.permute.xlu0 %495
        %497 = vrot.lane.b32.xlu0 %v212, 124
        %v498 = vpop.permute.xlu0 %497
        %vm499 = vcmp.lt.s32.totalorder %v290, 124
        %v500 = vsel %vm499, %v496, %v498
        %v501 = vsel %vm499, %v498, %v496
        %v502 = vlaneseq
        %v503 = vshrl.u32 %v502, 7
        %v504 = vsub.s32 5, %v503
        %v505 = vrot.slane %v277, %v504
        %v506 = vlaneseq
        %v507 = vshrl.u32 %v506, 7
        %v508 = vsub.s32 5, %v507
        %v509 = vrot.slane %v278, %v508
        %v510 = vmul.f32 %v500, %v505
        %v511 = vmul.f32 %v501, %v509
        %v512 = vadd.f32 %v469, %v510
        %v513 = vadd.f32 %v470, %v511
        %v514 = vlaneseq
        %v515 = vshrl.u32 %v514, 7
        %v516 = vsub.s32 6, %v515
        %v517 = vrot.slane %v279, %v516
        %v518 = vlaneseq
        %v519 = vshrl.u32 %v518, 7
        %v520 = vsub.s32 6, %v519
        %v521 = vrot.slane %v280, %v520
        %v522 = vmul.f32 %v500, %v517
        %v523 = vmul.f32 %v501, %v521
        %v524 = vadd.f32 %v481, %v522
        %v525 = vadd.f32 %v482, %v523
        %v526 = vlaneseq
        %v527 = vshrl.u32 %v526, 7
        %v528 = vsub.s32 7, %v527
        %v529 = vrot.slane %v281, %v528
        %v530 = vlaneseq
        %v531 = vshrl.u32 %v530, 7
        %v532 = vsub.s32 7, %v531
        %v533 = vrot.slane %v282, %v532
        %v534 = vmul.f32 %v500, %v529
        %v535 = vmul.f32 %v501, %v533
        %v536 = vadd.f32 %v493, %v534
        %v537 = vadd.f32 %v494, %v535
        %538 = vrot.lane.b32.xlu0 %v211, 100
        %v539 = vpop.permute.xlu0 %538
        %540 = vrot.lane.b32.xlu0 %v212, 100
        %v541 = vpop.permute.xlu0 %540
        %vm542 = vcmp.lt.s32.totalorder %v290, 100
        %v543 = vsel %vm542, %v539, %v541
        %v544 = vsel %vm542, %v541, %v539
        %v545 = vlaneseq
        %v546 = vshrl.u32 %v545, 7
        %v547 = vsub.s32 6, %v546
        %v548 = vrot.slane %v277, %v547
        %v549 = vlaneseq
        %v550 = vshrl.u32 %v549, 7
        %v551 = vsub.s32 6, %v550
        %v552 = vrot.slane %v278, %v551
        %v553 = vmul.f32 %v543, %v548
        %v554 = vmul.f32 %v544, %v552
        %v555 = vadd.f32 %v512, %v553
        %v556 = vadd.f32 %v513, %v554
        %v557 = vlaneseq
        %v558 = vshrl.u32 %v557, 7
        %v559 = vsub.s32 7, %v558
        %v560 = vrot.slane %v279, %v559
        %v561 = vlaneseq
        %v562 = vshrl.u32 %v561, 7
        %v563 = vsub.s32 7, %v562
        %v564 = vrot.slane %v280, %v563
        %v565 = vmul.f32 %v543, %v560
        %v566 = vmul.f32 %v544, %v564
        %v567 = vadd.f32 %v524, %v565
        %v568 = vadd.f32 %v525, %v566
        %v569 = vlaneseq
        %v570 = vshrl.u32 %v569, 7
        %v571 = vsub.s32 0, %v570
        %v572 = vrot.slane %v283, %v571
        %v573 = vlaneseq
        %v574 = vshrl.u32 %v573, 7
        %v575 = vsub.s32 0, %v574
        %v576 = vrot.slane %v284, %v575
        %v577 = vmul.f32 %v543, %v572
        %v578 = vmul.f32 %v544, %v576
        %v579 = vadd.f32 %v536, %v577
        %v580 = vadd.f32 %v537, %v578
        %581 = vrot.lane.b32.xlu0 %v211, 96
        %v582 = vpop.permute.xlu0 %581
        %583 = vrot.lane.b32.xlu0 %v212, 96
        %v584 = vpop.permute.xlu0 %583
        %vm585 = vcmp.lt.s32.totalorder %v290, 96
        %v586 = vsel %vm585, %v582, %v584
        %v587 = vsel %vm585, %v584, %v582
        %v588 = vlaneseq
        %v589 = vshrl.u32 %v588, 7
        %v590 = vsub.s32 7, %v589
        %v591 = vrot.slane %v277, %v590
        %v592 = vlaneseq
        %v593 = vshrl.u32 %v592, 7
        %v594 = vsub.s32 7, %v593
        %v595 = vrot.slane %v278, %v594
        %v596 = vmul.f32 %v586, %v591
        %v597 = vmul.f32 %v587, %v595
        %v598 = vadd.f32 %v555, %v596
        %v599 = vadd.f32 %v556, %v597
        %v600 = vlaneseq
        %v601 = vshrl.u32 %v600, 7
        %v602 = vsub.s32 0, %v601
        %v603 = vrot.slane %v281, %v602
        %v604 = vlaneseq
        %v605 = vshrl.u32 %v604, 7
        %v606 = vsub.s32 0, %v605
        %v607 = vrot.slane %v282, %v606
        %v608 = vmul.f32 %v586, %v603
        %v609 = vmul.f32 %v587, %v607
        %v610 = vadd.f32 %v567, %v608
        %v611 = vadd.f32 %v568, %v609
        %v612 = vlaneseq
        %v613 = vshrl.u32 %v612, 7
        %v614 = vsub.s32 1, %v613
        %v615 = vrot.slane %v283, %v614
        %v616 = vlaneseq
        %v617 = vshrl.u32 %v616, 7
        %v618 = vsub.s32 1, %v617
        %v619 = vrot.slane %v284, %v618
        %v620 = vmul.f32 %v586, %v615
        %v621 = vmul.f32 %v587, %v619
        %v622 = vadd.f32 %v579, %v620
        %v623 = vadd.f32 %v580, %v621
        %624 = vrot.lane.b32.xlu0 %v211, 92
        %v625 = vpop.permute.xlu0 %624
        %626 = vrot.lane.b32.xlu0 %v212, 92
        %v627 = vpop.permute.xlu0 %626
        %vm628 = vcmp.lt.s32.totalorder %v290, 92
        %v629 = vsel %vm628, %v625, %v627
        %v630 = vsel %vm628, %v627, %v625
        %v631 = vlaneseq
        %v632 = vshrl.u32 %v631, 7
        %v633 = vsub.s32 0, %v632
        %v634 = vrot.slane %v279, %v633
        %v635 = vlaneseq
        %v636 = vshrl.u32 %v635, 7
        %v637 = vsub.s32 0, %v636
        %v638 = vrot.slane %v280, %v637
        %v639 = vmul.f32 %v629, %v634
        %v640 = vmul.f32 %v630, %v638
        %v641 = vadd.f32 %v598, %v639
        %v642 = vadd.f32 %v599, %v640
        %v643 = vlaneseq
        %v644 = vshrl.u32 %v643, 7
        %v645 = vsub.s32 1, %v644
        %v646 = vrot.slane %v281, %v645
        %v647 = vlaneseq
        %v648 = vshrl.u32 %v647, 7
        %v649 = vsub.s32 1, %v648
        %v650 = vrot.slane %v282, %v649
        %v651 = vmul.f32 %v629, %v646
        %v652 = vmul.f32 %v630, %v650
        %v653 = vadd.f32 %v610, %v651
        %v654 = vadd.f32 %v611, %v652
        %v655 = vlaneseq
        %v656 = vshrl.u32 %v655, 7
        %v657 = vsub.s32 2, %v656
        %v658 = vrot.slane %v283, %v657
        %v659 = vlaneseq
        %v660 = vshrl.u32 %v659, 7
        %v661 = vsub.s32 2, %v660
        %v662 = vrot.slane %v284, %v661
        %v663 = vmul.f32 %v629, %v658
        %v664 = vmul.f32 %v630, %v662
        %v665 = vadd.f32 %v622, %v663
        %v666 = vadd.f32 %v623, %v664
        %v669 = vrot.slane %v641, 7
        %v670 = vrot.slane %v642, 7
        %vm673 = vcmask 1040384
        %v674 = vsel %vm673, 0.0, %v669
        %v675 = vsel %vm673, 0.0, %v670
        %v678 = vrot.slane %v665, 1
        %v679 = vrot.slane %v666, 1
        %vm682 = vcmask 1046528
        %v683 = vsel %vm682, %v678, 0.0
        %v684 = vsel %vm682, %v679, 0.0
        %v685 = vadd.f32 %v653, %v674
        %v686 = vadd.f32 %v654, %v675
        %v687 = vadd.f32 %v685, %v683
        %v688 = vadd.f32 %v686, %v684
        %v689 = vld [vmem:[%s2] ss:$8 sm:$0x3]
        %v691 = vlaneseq
        %v692 = vshrl.u32 %v691, 7
        %v693 = vsub.s32 0, %v692
        %v694 = vrot.slane %v689, %v693
        %v695 = vlaneseq
        %v696 = vshrl.u32 %v695, 7
        %v697 = vsub.s32 1, %v696
        %v698 = vrot.slane %v689, %v697
        %v701 = vadd.f32 %v687, %v694
        %v702 = vadd.f32 %v688, %v698
        %v703 = vmul.f32 %v701, %v701
        %v704 = vmul.f32 %v702, %v702
        %705 = vmatprep.subr.mxu0 %v214
        %706 = vmatpush1.msra.mxu0 %v213
        %707 = vmatprep.subr.mxu0 %v216
        %708 = vmatpush1.msra.mxu0 %v215
        %709 = vmatprep.subr.mxu0 %v218
        %710 = vmatpush1.msra.mxu0 %v217
        %711 = vmatprep.subr.mxu0 %v220
        %712 = vmatpush1.msra.mxu0 %v219
        %713 = vmatprep.subr.mxu0 %v222
        %714 = vmatpush1.msra.mxu0 %v221
        %715 = vmatprep.subr.mxu0 %v224
        %716 = vmatpush1.msra.mxu0 %v223
        %717 = vmatprep.subr.mxu0 %v226
        %718 = vmatpush1.msra.mxu0 %v225
        %719 = vmatprep.subr.mxu0 %v228
        %720 = vmatpush1.msra.mxu0 %v227
        %721 = vmatprep.subr.mxu0 %v230
        %722 = vmatpush1.msra.mxu0 %v229
        %723 = vmatprep.subr.mxu0 %v232
        %724 = vmatpush1.msra.mxu0 %v231
        %725 = vmatprep.subr.mxu0 %v234
        %726 = vmatpush1.msra.mxu0 %v233
        %727 = vmatprep.subr.mxu0 %v236
        %728 = vmatpush1.msra.mxu0 %v235
        %729 = vmatprep.subr.mxu0 %v238
        %730 = vmatpush1.msra.mxu0 %v237
        %731 = vmatprep.subr.mxu0 %v240
        %732 = vmatpush1.msra.mxu0 %v239
        %733 = vmatprep.subr.mxu0 %v242
        %734 = vmatpush1.msra.mxu0 %v241
        %735 = vmatprep.subr.mxu0 %v244
        %736 = vmatpush1.msra.mxu0 %v243
        %737 = vmatprep.subr.mxu0 %v246
        %738 = vmatpush1.msra.mxu0 %v245
        %739 = vmatprep.subr.mxu0 %v248
        %740 = vmatpush1.msra.mxu0 %v247
        %741 = vmatprep.subr.mxu0 %v250
        %742 = vmatpush1.msra.mxu0 %v249
        %743 = vmatprep.subr.mxu0 %v252
        %744 = vmatpush1.msra.mxu0 %v251
        %745 = vmatprep.subr.mxu0 %v254
        %746 = vmatpush1.msra.mxu0 %v253
        %747 = vmatprep.subr.mxu0 %v256
        %748 = vmatpush1.msra.mxu0 %v255
        %749 = vmatprep.subr.mxu0 %v258
        %750 = vmatpush1.msra.mxu0 %v257
        %751 = vmatprep.subr.mxu0 %v260
        %752 = vmatpush1.msra.mxu0 %v259
        %753 = vmatprep.subr.mxu0 %v262
        %754 = vmatpush1.msra.mxu0 %v261
        %755 = vmatprep.subr.mxu0 %v264
        %756 = vmatpush1.msra.mxu0 %v263
        %757 = vmatprep.subr.mxu0 %v266
        %758 = vmatpush1.msra.mxu0 %v265
        %759 = vmatprep.subr.mxu0 %v268
        %760 = vmatpush1.msra.mxu0 %v267
        %761 = vmatprep.subr.mxu0 %v270
        %762 = vmatpush1.msra.mxu0 %v269
        %763 = vmatprep.subr.mxu0 %v272
        %764 = vmatpush1.msra.mxu0 %v271
        %765 = vmatprep.subr.mxu0 %v274
        %766 = vmatpush1.msra.mxu0 %v273
        %767 = vmatprep.subr.mxu0 %v276
        %768 = vmatpush1.msra.mxu0 %v275
        %769 = vmatprep.mubr.f32.mxu0 %v702
        %770 = vmatmul.mubr.f32.gmra.mrb[0].mxu0 %v701
        %v771 = vpop.f32.mrb[0].mxu0
        %v772 = vadd.f32 0.0, %v771
        %v773 = vpop.f32.mrb[0].mxu0
        %v774 = vadd.f32 0.0, %v773
        %775 = vmatprep.mubr.f32.mxu0 %v704
        %776 = vmatmul.mubr.f32.gmra.mrb[0].mxu0 %v703
        %v777 = vpop.f32.mrb[0].mxu0
        %v778 = vadd.f32 0.0, %v777
        %v779 = vpop.f32.mrb[0].mxu0
        %v780 = vadd.f32 0.0, %v779
        %781 = vdwg.mxu0
        %v782 = vmul.f32 %v772, 0.25
        %v783 = vmul.f32 %v774, 0.25
        %v784 = vmul.f32 %v778, 0.25
        %v785 = vmul.f32 %v780, 0.25
        %v786 = vmul.f32 %v782, %v782
        %v787 = vmul.f32 %v783, %v783
        %v788 = vsub.f32 %v784, %v786
        %v789 = vsub.f32 %v785, %v787
        %v790 = vsub.f32 %v701, %v782
        %v791 = vsub.f32 %v702, %v783
        %v792 = vadd.f32 %v788, 1e-05
        %v793 = vadd.f32 %v789, 1e-05
        %v794 = vrsqrt.pop %v792
        %v795 = vrsqrt.pop %v793
        %v796 = vmul.f32 %v790, %v794
        %v797 = vmul.f32 %v791, %v795
        %s798 = scalar_lea.vmem %s2, 1
        %v799 = vld [vmem:[%s798] ss:$8 sm:$0x3]
        %v801 = vlaneseq
        %v802 = vshrl.u32 %v801, 7
        %v803 = vsub.s32 0, %v802
        %v804 = vrot.slane %v799, %v803
        %v805 = vlaneseq
        %v806 = vshrl.u32 %v805, 7
        %v807 = vsub.s32 1, %v806
        %v808 = vrot.slane %v799, %v807
        %v811 = vmul.f32 %v796, %v804
        %v812 = vmul.f32 %v797, %v808
        %s813 = scalar_lea.vmem %s2, 2
        %v814 = vld [vmem:[%s813] ss:$8 sm:$0x3]
        %v816 = vlaneseq
        %v817 = vshrl.u32 %v816, 7
        %v818 = vsub.s32 0, %v817
        %v819 = vrot.slane %v814, %v818
        %v820 = vlaneseq
        %v821 = vshrl.u32 %v820, 7
        %v822 = vsub.s32 1, %v821
        %v823 = vrot.slane %v814, %v822
        %v826 = vadd.f32 %v811, %v819
        %v827 = vadd.f32 %v812, %v823
        %s828 = scalar_lea.vmem %s2, 3
        %v829 = vld [vmem:[%s828] ss:$8 sm:$0x3]
        %v830 = vmax.f32 %v826, 0.0
        %v831 = vmax.f32 %v827, 0.0
        %v832 = vmin.f32 %v826, 0.0
        %v833 = vmin.f32 %v827, 0.0
        %v835 = vlaneseq
        %v836 = vshrl.u32 %v835, 7
        %v837 = vsub.s32 0, %v836
        %v838 = vrot.slane %v829, %v837
        %v839 = vlaneseq
        %v840 = vshrl.u32 %v839, 7
        %v841 = vsub.s32 1, %v840
        %v842 = vrot.slane %v829, %v841
        %v845 = vmul.f32 %v838, %v832
        %v846 = vmul.f32 %v842, %v833
        %v847 = vadd.f32 %v830, %v845
        %v848 = vadd.f32 %v831, %v846
        %s849 = scalar_lea.vmem %s1, 64
        %v850 = vld [vmem:[%s849] sm:$0xff]
        %v851 = vld [vmem:[%s849 + $0x8] sm:$0xff]
        %v852 = vld [vmem:[%s849 + $0x10] sm:$0xff]
        %v853 = vld [vmem:[%s849 + $0x18] sm:$0xff]
        %v854 = vld [vmem:[%s849 + $0x20] sm:$0xff]
        %v855 = vld [vmem:[%s849 + $0x28] sm:$0xff]
        %v856 = vld [vmem:[%s849 + $0x30] sm:$0x7]
        %v857 = vld [vmem:[%s849 + $0x38] sm:$0x7]
        %858 = vrot.lane.b32.xlu0 %v847, 36
        %v859 = vpop.permute.xlu0 %858
        %860 = vrot.lane.b32.xlu0 %v848, 36
        %v861 = vpop.permute.xlu0 %860
        %v862 = vsel %vm291, %v859, %v861
        %v863 = vsel %vm291, %v861, %v859
        %v864 = vlaneseq
        %v865 = vshrl.u32 %v864, 7
        %v866 = vsub.s32 0, %v865
        %v867 = vrot.slane %v850, %v866
        %v868 = vlaneseq
        %v869 = vshrl.u32 %v868, 7
        %v870 = vsub.s32 0, %v869
        %v871 = vrot.slane %v851, %v870
        %v872 = vmul.f32 %v863, %v867
        %v873 = vmul.f32 %v862, %v871
        %v874 = vadd.f32 %v872, 0.0
        %v875 = vadd.f32 %v873, 0.0
        %v876 = vlaneseq
        %v877 = vshrl.u32 %v876, 7
        %v878 = vsub.s32 1, %v877
        %v879 = vrot.slane %v852, %v878
        %v880 = vlaneseq
        %v881 = vshrl.u32 %v880, 7
        %v882 = vsub.s32 1, %v881
        %v883 = vrot.slane %v853, %v882
        %v884 = vmul.f32 %v863, %v879
        %v885 = vmul.f32 %v862, %v883
        %v886 = vadd.f32 %v884, 0.0
        %v887 = vadd.f32 %v885, 0.0
        %v888 = vlaneseq
        %v889 = vshrl.u32 %v888, 7
        %v890 = vsub.s32 2, %v889
        %v891 = vrot.slane %v854, %v890
        %v892 = vlaneseq
        %v893 = vshrl.u32 %v892, 7
        %v894 = vsub.s32 2, %v893
        %v895 = vrot.slane %v855, %v894
        %v896 = vmul.f32 %v863, %v891
        %v897 = vmul.f32 %v862, %v895
        %v898 = vadd.f32 %v896, 0.0
        %v899 = vadd.f32 %v897, 0.0
        %900 = vrot.lane.b32.xlu0 %v847, 32
        %v901 = vpop.permute.xlu0 %900
        %902 = vrot.lane.b32.xlu0 %v848, 32
        %v903 = vpop.permute.xlu0 %902
        %v904 = vsel %vm334, %v901, %v903
        %v905 = vsel %vm334, %v903, %v901
        %v906 = vlaneseq
        %v907 = vshrl.u32 %v906, 7
        %v908 = vsub.s32 1, %v907
        %v909 = vrot.slane %v850, %v908
        %v910 = vlaneseq
        %v911 = vshrl.u32 %v910, 7
        %v912 = vsub.s32 1, %v911
        %v913 = vrot.slane %v851, %v912
        %v914 = vmul.f32 %v905, %v909
        %v915 = vmul.f32 %v904, %v913
        %v916 = vadd.f32 %v874, %v914
        %v917 = vadd.f32 %v875, %v915
        %v918 = vlaneseq
        %v919 = vshrl.u32 %v918, 7
        %v920 = vsub.s32 2, %v919
        %v921 = vrot.slane %v852, %v920
        %v922 = vlaneseq
        %v923 = vshrl.u32 %v922, 7
        %v924 = vsub.s32 2, %v923
        %v925 = vrot.slane %v853, %v924
        %v926 = vmul.f32 %v905, %v921
        %v927 = vmul.f32 %v904, %v925
        %v928 = vadd.f32 %v886, %v926
        %v929 = vadd.f32 %v887, %v927
        %v930 = vlaneseq
        %v931 = vshrl.u32 %v930, 7
        %v932 = vsub.s32 3, %v931
        %v933 = vrot.slane %v854, %v932
        %v934 = vlaneseq
        %v935 = vshrl.u32 %v934, 7
        %v936 = vsub.s32 3, %v935
        %v937 = vrot.slane %v855, %v936
        %v938 = vmul.f32 %v905, %v933
        %v939 = vmul.f32 %v904, %v937
        %v940 = vadd.f32 %v898, %v938
        %v941 = vadd.f32 %v899, %v939
        %942 = vrot.lane.b32.xlu0 %v847, 28
        %v943 = vpop.permute.xlu0 %942
        %944 = vrot.lane.b32.xlu0 %v848, 28
        %v945 = vpop.permute.xlu0 %944
        %v946 = vsel %vm377, %v943, %v945
        %v947 = vsel %vm377, %v945, %v943
        %v948 = vlaneseq
        %v949 = vshrl.u32 %v948, 7
        %v950 = vsub.s32 2, %v949
        %v951 = vrot.slane %v850, %v950
        %v952 = vlaneseq
        %v953 = vshrl.u32 %v952, 7
        %v954 = vsub.s32 2, %v953
        %v955 = vrot.slane %v851, %v954
        %v956 = vmul.f32 %v947, %v951
        %v957 = vmul.f32 %v946, %v955
        %v958 = vadd.f32 %v916, %v956
        %v959 = vadd.f32 %v917, %v957
        %v960 = vlaneseq
        %v961 = vshrl.u32 %v960, 7
        %v962 = vsub.s32 3, %v961
        %v963 = vrot.slane %v852, %v962
        %v964 = vlaneseq
        %v965 = vshrl.u32 %v964, 7
        %v966 = vsub.s32 3, %v965
        %v967 = vrot.slane %v853, %v966
        %v968 = vmul.f32 %v947, %v963
        %v969 = vmul.f32 %v946, %v967
        %v970 = vadd.f32 %v928, %v968
        %v971 = vadd.f32 %v929, %v969
        %v972 = vlaneseq
        %v973 = vshrl.u32 %v972, 7
        %v974 = vsub.s32 4, %v973
        %v975 = vrot.slane %v854, %v974
        %v976 = vlaneseq
        %v977 = vshrl.u32 %v976, 7
        %v978 = vsub.s32 4, %v977
        %v979 = vrot.slane %v855, %v978
        %v980 = vmul.f32 %v947, %v975
        %v981 = vmul.f32 %v946, %v979
        %v982 = vadd.f32 %v940, %v980
        %v983 = vadd.f32 %v941, %v981
        %984 = vrot.lane.b32.xlu0 %v847, 4
        %v985 = vpop.permute.xlu0 %984
        %986 = vrot.lane.b32.xlu0 %v848, 4
        %v987 = vpop.permute.xlu0 %986
        %v988 = vsel %vm420, %v985, %v987
        %v989 = vsel %vm420, %v987, %v985
        %v990 = vlaneseq
        %v991 = vshrl.u32 %v990, 7
        %v992 = vsub.s32 3, %v991
        %v993 = vrot.slane %v850, %v992
        %v994 = vlaneseq
        %v995 = vshrl.u32 %v994, 7
        %v996 = vsub.s32 3, %v995
        %v997 = vrot.slane %v851, %v996
        %v998 = vmul.f32 %v989, %v993
        %v999 = vmul.f32 %v988, %v997
        %v1000 = vadd.f32 %v958, %v998
        %v1001 = vadd.f32 %v959, %v999
        %v1002 = vlaneseq
        %v1003 = vshrl.u32 %v1002, 7
        %v1004 = vsub.s32 4, %v1003
        %v1005 = vrot.slane %v852, %v1004
        %v1006 = vlaneseq
        %v1007 = vshrl.u32 %v1006, 7
        %v1008 = vsub.s32 4, %v1007
        %v1009 = vrot.slane %v853, %v1008
        %v1010 = vmul.f32 %v989, %v1005
        %v1011 = vmul.f32 %v988, %v1009
        %v1012 = vadd.f32 %v970, %v1010
        %v1013 = vadd.f32 %v971, %v1011
        %v1014 = vlaneseq
        %v1015 = vshrl.u32 %v1014, 7
        %v1016 = vsub.s32 5, %v1015
        %v1017 = vrot.slane %v854, %v1016
        %v1018 = vlaneseq
        %v1019 = vshrl.u32 %v1018, 7
        %v1020 = vsub.s32 5, %v1019
        %v1021 = vrot.slane %v855, %v1020
        %v1022 = vmul.f32 %v989, %v1017
        %v1023 = vmul.f32 %v988, %v1021
        %v1024 = vadd.f32 %v982, %v1022
        %v1025 = vadd.f32 %v983, %v1023
        %v1026 = vlaneseq
        %v1027 = vshrl.u32 %v1026, 7
        %v1028 = vsub.s32 4, %v1027
        %v1029 = vrot.slane %v850, %v1028
        %v1030 = vlaneseq
        %v1031 = vshrl.u32 %v1030, 7
        %v1032 = vsub.s32 4, %v1031
        %v1033 = vrot.slane %v851, %v1032
        %v1034 = vmul.f32 %v847, %v1029
        %v1035 = vmul.f32 %v848, %v1033
        %v1036 = vadd.f32 %v1000, %v1034
        %v1037 = vadd.f32 %v1001, %v1035
        %v1038 = vlaneseq
        %v1039 = vshrl.u32 %v1038, 7
        %v1040 = vsub.s32 5, %v1039
        %v1041 = vrot.slane %v852, %v1040
        %v1042 = vlaneseq
        %v1043 = vshrl.u32 %v1042, 7
        %v1044 = vsub.s32 5, %v1043
        %v1045 = vrot.slane %v853, %v1044
        %v1046 = vmul.f32 %v847, %v1041
        %v1047 = vmul.f32 %v848, %v1045
        %v1048 = vadd.f32 %v1012, %v1046
        %v1049 = vadd.f32 %v1013, %v1047
        %v1050 = vlaneseq
        %v1051 = vshrl.u32 %v1050, 7
        %v1052 = vsub.s32 6, %v1051
        %v1053 = vrot.slane %v854, %v1052
        %v1054 = vlaneseq
        %v1055 = vshrl.u32 %v1054, 7
        %v1056 = vsub.s32 6, %v1055
        %v1057 = vrot.slane %v855, %v1056
        %v1058 = vmul.f32 %v847, %v1053
        %v1059 = vmul.f32 %v848, %v1057
        %v1060 = vadd.f32 %v1024, %v1058
        %v1061 = vadd.f32 %v1025, %v1059
        %1062 = vrot.lane.b32.xlu0 %v847, 124
        %v1063 = vpop.permute.xlu0 %1062
        %1064 = vrot.lane.b32.xlu0 %v848, 124
        %v1065 = vpop.permute.xlu0 %1064
        %v1066 = vsel %vm499, %v1063, %v1065
        %v1067 = vsel %vm499, %v1065, %v1063
        %v1068 = vlaneseq
        %v1069 = vshrl.u32 %v1068, 7
        %v1070 = vsub.s32 5, %v1069
        %v1071 = vrot.slane %v850, %v1070
        %v1072 = vlaneseq
        %v1073 = vshrl.u32 %v1072, 7
        %v1074 = vsub.s32 5, %v1073
        %v1075 = vrot.slane %v851, %v1074
        %v1076 = vmul.f32 %v1066, %v1071
        %v1077 = vmul.f32 %v1067, %v1075
        %v1078 = vadd.f32 %v1036, %v1076
        %v1079 = vadd.f32 %v1037, %v1077
        %v1080 = vlaneseq
        %v1081 = vshrl.u32 %v1080, 7
        %v1082 = vsub.s32 6, %v1081
        %v1083 = vrot.slane %v852, %v1082
        %v1084 = vlaneseq
        %v1085 = vshrl.u32 %v1084, 7
        %v1086 = vsub.s32 6, %v1085
        %v1087 = vrot.slane %v853, %v1086
        %v1088 = vmul.f32 %v1066, %v1083
        %v1089 = vmul.f32 %v1067, %v1087
        %v1090 = vadd.f32 %v1048, %v1088
        %v1091 = vadd.f32 %v1049, %v1089
        %v1092 = vlaneseq
        %v1093 = vshrl.u32 %v1092, 7
        %v1094 = vsub.s32 7, %v1093
        %v1095 = vrot.slane %v854, %v1094
        %v1096 = vlaneseq
        %v1097 = vshrl.u32 %v1096, 7
        %v1098 = vsub.s32 7, %v1097
        %v1099 = vrot.slane %v855, %v1098
        %v1100 = vmul.f32 %v1066, %v1095
        %v1101 = vmul.f32 %v1067, %v1099
        %v1102 = vadd.f32 %v1060, %v1100
        %v1103 = vadd.f32 %v1061, %v1101
        %1104 = vrot.lane.b32.xlu0 %v847, 100
        %v1105 = vpop.permute.xlu0 %1104
        %1106 = vrot.lane.b32.xlu0 %v848, 100
        %v1107 = vpop.permute.xlu0 %1106
        %v1108 = vsel %vm542, %v1105, %v1107
        %v1109 = vsel %vm542, %v1107, %v1105
        %v1110 = vlaneseq
        %v1111 = vshrl.u32 %v1110, 7
        %v1112 = vsub.s32 6, %v1111
        %v1113 = vrot.slane %v850, %v1112
        %v1114 = vlaneseq
        %v1115 = vshrl.u32 %v1114, 7
        %v1116 = vsub.s32 6, %v1115
        %v1117 = vrot.slane %v851, %v1116
        %v1118 = vmul.f32 %v1108, %v1113
        %v1119 = vmul.f32 %v1109, %v1117
        %v1120 = vadd.f32 %v1078, %v1118
        %v1121 = vadd.f32 %v1079, %v1119
        %v1122 = vlaneseq
        %v1123 = vshrl.u32 %v1122, 7
        %v1124 = vsub.s32 7, %v1123
        %v1125 = vrot.slane %v852, %v1124
        %v1126 = vlaneseq
        %v1127 = vshrl.u32 %v1126, 7
        %v1128 = vsub.s32 7, %v1127
        %v1129 = vrot.slane %v853, %v1128
        %v1130 = vmul.f32 %v1108, %v1125
        %v1131 = vmul.f32 %v1109, %v1129
        %v1132 = vadd.f32 %v1090, %v1130
        %v1133 = vadd.f32 %v1091, %v1131
        %v1134 = vlaneseq
        %v1135 = vshrl.u32 %v1134, 7
        %v1136 = vsub.s32 0, %v1135
        %v1137 = vrot.slane %v856, %v1136
        %v1138 = vlaneseq
        %v1139 = vshrl.u32 %v1138, 7
        %v1140 = vsub.s32 0, %v1139
        %v1141 = vrot.slane %v857, %v1140
        %v1142 = vmul.f32 %v1108, %v1137
        %v1143 = vmul.f32 %v1109, %v1141
        %v1144 = vadd.f32 %v1102, %v1142
        %v1145 = vadd.f32 %v1103, %v1143
        %1146 = vrot.lane.b32.xlu0 %v847, 96
        %v1147 = vpop.permute.xlu0 %1146
        %1148 = vrot.lane.b32.xlu0 %v848, 96
        %v1149 = vpop.permute.xlu0 %1148
        %v1150 = vsel %vm585, %v1147, %v1149
        %v1151 = vsel %vm585, %v1149, %v1147
        %v1152 = vlaneseq
        %v1153 = vshrl.u32 %v1152, 7
        %v1154 = vsub.s32 7, %v1153
        %v1155 = vrot.slane %v850, %v1154
        %v1156 = vlaneseq
        %v1157 = vshrl.u32 %v1156, 7
        %v1158 = vsub.s32 7, %v1157
        %v1159 = vrot.slane %v851, %v1158
        %v1160 = vmul.f32 %v1150, %v1155
        %v1161 = vmul.f32 %v1151, %v1159
        %v1162 = vadd.f32 %v1120, %v1160
        %v1163 = vadd.f32 %v1121, %v1161
        %v1164 = vlaneseq
        %v1165 = vshrl.u32 %v1164, 7
        %v1166 = vsub.s32 0, %v1165
        %v1167 = vrot.slane %v854, %v1166
        %v1168 = vlaneseq
        %v1169 = vshrl.u32 %v1168, 7
        %v1170 = vsub.s32 0, %v1169
        %v1171 = vrot.slane %v855, %v1170
        %v1172 = vmul.f32 %v1150, %v1167
        %v1173 = vmul.f32 %v1151, %v1171
        %v1174 = vadd.f32 %v1132, %v1172
        %v1175 = vadd.f32 %v1133, %v1173
        %v1176 = vlaneseq
        %v1177 = vshrl.u32 %v1176, 7
        %v1178 = vsub.s32 1, %v1177
        %v1179 = vrot.slane %v856, %v1178
        %v1180 = vlaneseq
        %v1181 = vshrl.u32 %v1180, 7
        %v1182 = vsub.s32 1, %v1181
        %v1183 = vrot.slane %v857, %v1182
        %v1184 = vmul.f32 %v1150, %v1179
        %v1185 = vmul.f32 %v1151, %v1183
        %v1186 = vadd.f32 %v1144, %v1184
        %v1187 = vadd.f32 %v1145, %v1185
        %1188 = vrot.lane.b32.xlu0 %v847, 92
        %v1189 = vpop.permute.xlu0 %1188
        %1190 = vrot.lane.b32.xlu0 %v848, 92
        %v1191 = vpop.permute.xlu0 %1190
        %v1192 = vsel %vm628, %v1189, %v1191
        %v1193 = vsel %vm628, %v1191, %v1189
        %v1194 = vlaneseq
        %v1195 = vshrl.u32 %v1194, 7
        %v1196 = vsub.s32 0, %v1195
        %v1197 = vrot.slane %v852, %v1196
        %v1198 = vlaneseq
        %v1199 = vshrl.u32 %v1198, 7
        %v1200 = vsub.s32 0, %v1199
        %v1201 = vrot.slane %v853, %v1200
        %v1202 = vmul.f32 %v1192, %v1197
        %v1203 = vmul.f32 %v1193, %v1201
        %v1204 = vadd.f32 %v1162, %v1202
        %v1205 = vadd.f32 %v1163, %v1203
        %v1206 = vlaneseq
        %v1207 = vshrl.u32 %v1206, 7
        %v1208 = vsub.s32 1, %v1207
        %v1209 = vrot.slane %v854, %v1208
        %v1210 = vlaneseq
        %v1211 = vshrl.u32 %v1210, 7
        %v1212 = vsub.s32 1, %v1211
        %v1213 = vrot.slane %v855, %v1212
        %v1214 = vmul.f32 %v1192, %v1209
        %v1215 = vmul.f32 %v1193, %v1213
        %v1216 = vadd.f32 %v1174, %v1214
        %v1217 = vadd.f32 %v1175, %v1215
        %v1218 = vlaneseq
        %v1219 = vshrl.u32 %v1218, 7
        %v1220 = vsub.s32 2, %v1219
        %v1221 = vrot.slane %v856, %v1220
        %v1222 = vlaneseq
        %v1223 = vshrl.u32 %v1222, 7
        %v1224 = vsub.s32 2, %v1223
        %v1225 = vrot.slane %v857, %v1224
        %v1226 = vmul.f32 %v1192, %v1221
        %v1227 = vmul.f32 %v1193, %v1225
        %v1228 = vadd.f32 %v1186, %v1226
        %v1229 = vadd.f32 %v1187, %v1227
        %v1232 = vrot.slane %v1204, 7
        %v1233 = vrot.slane %v1205, 7
        %v1236 = vsel %vm673, 0.0, %v1232
        %v1237 = vsel %vm673, 0.0, %v1233
        %v1240 = vrot.slane %v1228, 1
        %v1241 = vrot.slane %v1229, 1
        %v1244 = vsel %vm682, %v1240, 0.0
        %v1245 = vsel %vm682, %v1241, 0.0
        %v1246 = vadd.f32 %v1216, %v1236
        %v1247 = vadd.f32 %v1217, %v1237
        %v1248 = vadd.f32 %v1246, %v1244
        %v1249 = vadd.f32 %v1247, %v1245
        %s1250 = scalar_lea.vmem %s2, 4
        %v1251 = vld [vmem:[%s1250] ss:$8 sm:$0x3]
        %v1253 = vlaneseq
        %v1254 = vshrl.u32 %v1253, 7
        %v1255 = vsub.s32 0, %v1254
        %v1256 = vrot.slane %v1251, %v1255
        %v1257 = vlaneseq
        %v1258 = vshrl.u32 %v1257, 7
        %v1259 = vsub.s32 1, %v1258
        %v1260 = vrot.slane %v1251, %v1259
        %v1263 = vadd.f32 %v1248, %v1256
        %v1264 = vadd.f32 %v1249, %v1260
        %v1265 = vmul.f32 %v1263, %v1263
        %v1266 = vmul.f32 %v1264, %v1264
        %1267 = vmatprep.subr.mxu0 %v214
        %1268 = vmatpush1.msra.mxu0 %v213
        %1269 = vmatprep.subr.mxu0 %v216
        %1270 = vmatpush1.msra.mxu0 %v215
        %1271 = vmatprep.subr.mxu0 %v218
        %1272 = vmatpush1.msra.mxu0 %v217
        %1273 = vmatprep.subr.mxu0 %v220
        %1274 = vmatpush1.msra.mxu0 %v219
        %1275 = vmatprep.subr.mxu0 %v222
        %1276 = vmatpush1.msra.mxu0 %v221
        %1277 = vmatprep.subr.mxu0 %v224
        %1278 = vmatpush1.msra.mxu0 %v223
        %1279 = vmatprep.subr.mxu0 %v226
        %1280 = vmatpush1.msra.mxu0 %v225
        %1281 = vmatprep.subr.mxu0 %v228
        %1282 = vmatpush1.msra.mxu0 %v227
        %1283 = vmatprep.subr.mxu0 %v230
        %1284 = vmatpush1.msra.mxu0 %v229
        %1285 = vmatprep.subr.mxu0 %v232
        %1286 = vmatpush1.msra.mxu0 %v231
        %1287 = vmatprep.subr.mxu0 %v234
        %1288 = vmatpush1.msra.mxu0 %v233
        %1289 = vmatprep.subr.mxu0 %v236
        %1290 = vmatpush1.msra.mxu0 %v235
        %1291 = vmatprep.subr.mxu0 %v238
        %1292 = vmatpush1.msra.mxu0 %v237
        %1293 = vmatprep.subr.mxu0 %v240
        %1294 = vmatpush1.msra.mxu0 %v239
        %1295 = vmatprep.subr.mxu0 %v242
        %1296 = vmatpush1.msra.mxu0 %v241
        %1297 = vmatprep.subr.mxu0 %v244
        %1298 = vmatpush1.msra.mxu0 %v243
        %1299 = vmatprep.subr.mxu0 %v246
        %1300 = vmatpush1.msra.mxu0 %v245
        %1301 = vmatprep.subr.mxu0 %v248
        %1302 = vmatpush1.msra.mxu0 %v247
        %1303 = vmatprep.subr.mxu0 %v250
        %1304 = vmatpush1.msra.mxu0 %v249
        %1305 = vmatprep.subr.mxu0 %v252
        %1306 = vmatpush1.msra.mxu0 %v251
        %1307 = vmatprep.subr.mxu0 %v254
        %1308 = vmatpush1.msra.mxu0 %v253
        %1309 = vmatprep.subr.mxu0 %v256
        %1310 = vmatpush1.msra.mxu0 %v255
        %1311 = vmatprep.subr.mxu0 %v258
        %1312 = vmatpush1.msra.mxu0 %v257
        %1313 = vmatprep.subr.mxu0 %v260
        %1314 = vmatpush1.msra.mxu0 %v259
        %1315 = vmatprep.subr.mxu0 %v262
        %1316 = vmatpush1.msra.mxu0 %v261
        %1317 = vmatprep.subr.mxu0 %v264
        %1318 = vmatpush1.msra.mxu0 %v263
        %1319 = vmatprep.subr.mxu0 %v266
        %1320 = vmatpush1.msra.mxu0 %v265
        %1321 = vmatprep.subr.mxu0 %v268
        %1322 = vmatpush1.msra.mxu0 %v267
        %1323 = vmatprep.subr.mxu0 %v270
        %1324 = vmatpush1.msra.mxu0 %v269
        %1325 = vmatprep.subr.mxu0 %v272
        %1326 = vmatpush1.msra.mxu0 %v271
        %1327 = vmatprep.subr.mxu0 %v274
        %1328 = vmatpush1.msra.mxu0 %v273
        %1329 = vmatprep.subr.mxu0 %v276
        %1330 = vmatpush1.msra.mxu0 %v275
        %1331 = vmatprep.mubr.f32.mxu0 %v1264
        %1332 = vmatmul.mubr.f32.gmra.mrb[0].mxu0 %v1263
        %v1333 = vpop.f32.mrb[0].mxu0
        %v1334 = vadd.f32 0.0, %v1333
        %v1335 = vpop.f32.mrb[0].mxu0
        %v1336 = vadd.f32 0.0, %v1335
        %1337 = vmatprep.mubr.f32.mxu0 %v1266
        %1338 = vmatmul.mubr.f32.gmra.mrb[0].mxu0 %v1265
        %v1339 = vpop.f32.mrb[0].mxu0
        %v1340 = vadd.f32 0.0, %v1339
        %v1341 = vpop.f32.mrb[0].mxu0
        %v1342 = vadd.f32 0.0, %v1341
        %1343 = vdwg.mxu0
        %v1344 = vmul.f32 %v1334, 0.25
        %v1345 = vmul.f32 %v1336, 0.25
        %v1346 = vmul.f32 %v1340, 0.25
        %v1347 = vmul.f32 %v1342, 0.25
        %v1348 = vmul.f32 %v1344, %v1344
        %v1349 = vmul.f32 %v1345, %v1345
        %v1350 = vsub.f32 %v1346, %v1348
        %v1351 = vsub.f32 %v1347, %v1349
        %v1352 = vsub.f32 %v1263, %v1344
        %v1353 = vsub.f32 %v1264, %v1345
        %v1354 = vadd.f32 %v1350, 1e-05
        %v1355 = vadd.f32 %v1351, 1e-05
        %v1356 = vrsqrt.pop %v1354
        %v1357 = vrsqrt.pop %v1355
        %v1358 = vmul.f32 %v1352, %v1356
        %v1359 = vmul.f32 %v1353, %v1357
        %s1360 = scalar_lea.vmem %s2, 5
        %v1361 = vld [vmem:[%s1360] ss:$8 sm:$0x3]
        %v1363 = vlaneseq
        %v1364 = vshrl.u32 %v1363, 7
        %v1365 = vsub.s32 0, %v1364
        %v1366 = vrot.slane %v1361, %v1365
        %v1367 = vlaneseq
        %v1368 = vshrl.u32 %v1367, 7
        %v1369 = vsub.s32 1, %v1368
        %v1370 = vrot.slane %v1361, %v1369
        %v1373 = vmul.f32 %v1358, %v1366
        %v1374 = vmul.f32 %v1359, %v1370
        %s1375 = scalar_lea.vmem %s2, 6
        %v1376 = vld [vmem:[%s1375] ss:$8 sm:$0x3]
        %v1378 = vlaneseq
        %v1379 = vshrl.u32 %v1378, 7
        %v1380 = vsub.s32 0, %v1379
        %v1381 = vrot.slane %v1376, %v1380
        %v1382 = vlaneseq
        %v1383 = vshrl.u32 %v1382, 7
        %v1384 = vsub.s32 1, %v1383
        %v1385 = vrot.slane %v1376, %v1384
        %v1388 = vadd.f32 %v1373, %v1381
        %v1389 = vadd.f32 %v1374, %v1385
        %s1390 = scalar_lea.vmem %s2, 7
        %v1391 = vld [vmem:[%s1390] ss:$8 sm:$0x3]
        %v1392 = vmax.f32 %v1388, 0.0
        %v1393 = vmax.f32 %v1389, 0.0
        %v1394 = vmin.f32 %v1388, 0.0
        %v1395 = vmin.f32 %v1389, 0.0
        %v1397 = vlaneseq
        %v1398 = vshrl.u32 %v1397, 7
        %v1399 = vsub.s32 0, %v1398
        %v1400 = vrot.slane %v1391, %v1399
        %v1401 = vlaneseq
        %v1402 = vshrl.u32 %v1401, 7
        %v1403 = vsub.s32 1, %v1402
        %v1404 = vrot.slane %v1391, %v1403
        %v1407 = vmul.f32 %v1400, %v1394
        %v1408 = vmul.f32 %v1404, %v1395
        %v1409 = vadd.f32 %v1392, %v1407
        %v1410 = vadd.f32 %v1393, %v1408
        %v1411 = vmul.f32 %v1409, %v211
        %v1412 = vmul.f32 %v1410, %v212
        %1413 = vst [vmem:[%s205] sm:$0xff] %v1411
        %1414 = vst [vmem:[%s205 + $0x8] sm:$0xff] %v1412
        %s1415 = sand.u32 %s116, 1
        %s1416 = scalar_lea.sflag [#allocation4], %s1415
        %s1417 = sand.u32 %s116, 1
        %s1418 = smul.addr %s1417, 16
        %s1419 = scalar_lea.vmem [#allocation5], %s1418
        // Predicated region
        $region41: #{tpu_custom_call.1} parent=35 // pred_check
          %p1420 = pneg %p126
        $region42: #{tpu_custom_call.1} parent=35 // pred_check_branch
          %1422 = sbr.rel (%p1420) target = $region44
        $region43: #{tpu_custom_call.1} parent=35 // pred_region
          %s1424 = ssub.s32 256, 256
          %1425 = vsyncadd %s1416, %s1424
          %s1426 = smul.addr %s19, 2
          %s1427 = smul.addr %s1426, 128
          %s1428 = scalar_lea.hbm %s4, %s1427
          %s1430 = sshll.u32 %s1419, 4
          %s1431 = int_to_ptr.vmem [resolvable:$true] %s1430
          %1433 = dma.vmem_to_hbm [thread:$0]  %s1431, 256, %s1428, %s1416
        $region44: #{tpu_custom_call.1} parent=35 // pred_fallthru
          _
      $region36: #{tpu_custom_call.1} parent=5 // pred_fallthru
        _
      %p1434 = scmp.le.s32.totalorder 2, %s14
      // Predicated region
      $region45: #{tpu_custom_call.1} parent=5 // pred_check
        %p1435 = pneg %p1434
      $region46: #{tpu_custom_call.1} parent=5 // pred_check_branch
        %1437 = sbr.rel (%p1435) target = $region48
      $region47: #{tpu_custom_call.1} parent=5 // pred_region
        %s1438 = ssub.s32 %s14, 2
        // Predicated region
        $region49: #{tpu_custom_call.1} parent=47 // pred_check
          %p1439 = pneg %p132
        $region50: #{tpu_custom_call.1} parent=47 // pred_check_branch
          %1441 = sbr.rel (%p1439) target = $region52
        $region51: #{tpu_custom_call.1} parent=47 // pred_region
          %s1442 = sand.u32 %s117, 1
          %s1443 = scalar_lea.sflag [#allocation4], %s1442
          %s1444 = sand.u32 %s117, 1
          %s1445 = smul.addr %s1444, 16
          %s1446 = scalar_lea.vmem [#allocation5], %s1445
          %1447 = dma.done %s1443, 256
        $region52: #{tpu_custom_call.1} parent=47 // pred_fallthru
          _
      $region48: #{tpu_custom_call.1} parent=5 // pred_fallthru
        _
    $region6: #{tpu_custom_call.1} parent=1 // loop_footer
      %s18 = sadd.s32 1, %s14
    $region7: #{tpu_custom_call.1} parent=1 // loop_footer_branch
      %13 = sbr.rel target = $region3
    $region8: #{tpu_custom_call.1} parent=1 // loop_exit
      _
    %1448 = vsyncpa [#allocation3], 1
    %s1449 = scalar_lea.sflag [#allocation3], 1
    %1450 = vsyncpa %s1449, 1
    %1451 = vsyncpa [#allocation4], 1
    %s1452 = scalar_lea.sflag [#allocation4], 1
    %1453 = vsyncpa %s1452, 1

</llo_original>
